<compile_context>
chip_gen: v5e
topology: v5e:2x2
jax: 0.10.0
libtpu: 0.0.40
codegen_flags: <defaults>
</compile_context>

<pallas_src>
import functools

import jax
import jax.numpy as jnp
from jax.experimental import pallas as pl
from jax.experimental.pallas import tpu as pltpu

EPS = 1e-5  # torch.nn.InstanceNorm2d default


def _reflect_index(r, H):
    """Source row for padded row r (pad=1, 'reflect')."""
    rr = r - 1
    if rr < 0:
        return -rr                     # row -1 -> row 1
    if rr > H - 1:
        return 2 * (H - 1) - rr        # row H  -> row H-2
    return rr


def resnet_block_kernel(x_ref, w_ref, out_ref, xpad_ref, *, H, W, C_TILE):
    # x_ref   : (C, H*W)          one batch element, flattened spatial (lane-dense)
    # w_ref   : (9, C_TILE, C)    bf16 conv weights for this Cout tile, tap = dh*3+dw
    # out_ref : (C_TILE, H*W)
    # xpad_ref: (C, Hp*Wp + 2)    bf16 VMEM scratch, flattened reflection-padded x
    C, HW = x_ref.shape
    Hp, Wp = H + 2, W + 2
    Lext = H * Wp                      # extended (wrap-column) conv output length
    t = pl.program_id(1)               # Cout tile index

    # ---- Build reflection pad (pad=1) once per batch element (tile == 0),
    #      flattened row-major, bf16, one vector store per padded row.
    @pl.when(t == 0)
    def _build_pad():
        xb = x_ref[...].astype(jnp.bfloat16)                     # single aligned load
        for r in range(Hp):
            rr = _reflect_index(r, H)
            row = xb[:, rr * W:(rr + 1) * W]                     # (C, W)
            padded = jnp.concatenate(
                [row[:, 1:2], row, row[:, W - 2:W - 1]], axis=1)  # (C, Wp)
            xpad_ref[:, r * Wp:(r + 1) * Wp] = padded
        # Largest tap offset reads 2 elements past Hp*Wp; give them defined values.
        xpad_ref[:, Hp * Wp:Hp * Wp + 2] = jnp.zeros((C, 2), jnp.bfloat16)

    # ---- 3x3 conv = 9 flat-offset shifted matmuls (bf16 MXU, f32 accumulate),
    #      operands sliced straight from the bf16 scratch ref (no full reload).
    acc = jnp.zeros((C_TILE, Lext), jnp.float32)
    for dh in range(3):
        for dw in range(3):
            s = dh * Wp + dw
            acc = acc + jnp.dot(w_ref[dh * 3 + dw], xpad_ref[:, s:s + Lext],
                                preferred_element_type=jnp.float32)

    # ---- Drop the 2 wrap columns per row (single relayout): -> (C_TILE, H*W).
    conv = acc.reshape(C_TILE, H, Wp)[:, :, :W].reshape(C_TILE, HW)

    # ---- InstanceNorm2d(affine=False): two-pass stats, rsqrt on the EUP.
    inv_hw = 1.0 / float(HW)
    mean = jnp.sum(conv, axis=1, keepdims=True) * inv_hw
    centered = conv - mean
    var = jnp.sum(centered * centered, axis=1, keepdims=True) * inv_hw
    rstd = jax.lax.rsqrt(var + EPS)

    # ---- Residual add (f32 residual path), lane-dense store.
    c0 = pl.multiple_of(t * C_TILE, C_TILE)
    x_tile = x_ref[pl.ds(c0, C_TILE), :].astype(jnp.float32)
    out_ref[...] = (x_tile + centered * rstd).astype(out_ref.dtype)


def pack_resnet_block_weights(w):
    """OIHW (C, C, 3, 3) -> (9, Cout, Cin) bf16, tap index = dh*3 + dw.

    Call once at parameter-load time (hoists the transpose/cast out of the
    per-forward path; the kernel keeps the weight tile resident across grid
    steps via a constant batch index in its BlockSpec).
    """
    C = w.shape[0]
    return jnp.transpose(w, (2, 3, 0, 1)).reshape(9, C, C).astype(jnp.bfloat16)


def _pick_c_tile(C):
    if C <= 128:
        return C
    for cand in (128, 64, 32, 16, 8):
        if C % cand == 0:
            return cand
    return C


def _pick_vmem_limit_bytes(est_bytes):
    mib = 1024 * 1024
    try:
        phys = int(pltpu.get_tpu_info().vmem_capacity_bytes)
    except Exception:
        phys = 64 * mib  # conservative: assume v7x-sized per-core VMEM
    # Leave headroom for pipeline double-buffers / compiler scratch:
    # 48 MiB where physical VMEM is 128 MiB (v5e/v6e), <= 40 MiB on v7x.
    cap = 48 * mib if phys >= 96 * mib else 40 * mib
    return int(min(cap, max(32 * mib, 2 * est_bytes)))


def resnet_block_forward(x, w9):
    """out = x + InstanceNorm2d(affine=False)(Conv3x3(ReflectionPad2d(1)(x))).

    x : (N, C, H, W) float32.
    w9: packed conv weights from pack_resnet_block_weights, shape (9, C, C) bf16.

    The conv bias is intentionally NOT an input: InstanceNorm(affine=False)
    subtracts the per-channel mean immediately after the conv, so a per-channel
    bias cancels exactly.  This is only valid because there is no ReLU/dropout
    between conv and norm in this module's use_dropout=False graph.
    """
    N, C, H, W = x.shape
    assert H >= 2 and W >= 2, "reflection pad=1 requires H, W >= 2"
    assert w9.shape == (9, C, C), "pass pre-packed weights (pack_resnet_block_weights)"

    Hp, Wp = H + 2, W + 2
    HW = H * W
    C_TILE = _pick_c_tile(C)
    n_tiles = C // C_TILE

    xf = x.reshape(N, C, HW)                                      # free reshape

    kernel = functools.partial(resnet_block_kernel, H=H, W=W, C_TILE=C_TILE)

    grid_spec = pltpu.PrefetchScalarGridSpec(
        num_scalar_prefetch=0,
        grid=(N, n_tiles),
        in_specs=[
            # Full-channel input block; constant block index across the Cout
            # tile axis keeps it resident (single x DMA per batch element).
            pl.BlockSpec((None, C, HW), lambda n, t: (n, 0, 0)),
            # Per-tile weight slab (9, C_TILE, C); constant across n.
            pl.BlockSpec((9, C_TILE, C), lambda n, t: (0, t, 0)),
        ],
        out_specs=pl.BlockSpec((None, C_TILE, HW), lambda n, t: (n, t, 0)),
        scratch_shapes=[pltpu.VMEM((C, Hp * Wp + 2), jnp.bfloat16)],
    )

    # VMEM working-set estimate (per grid step) used to size the compiler limit.
    est = (C * (Hp * Wp + 2) * 2            # bf16 pad scratch
           + 2 * C * HW * 4                 # double-buffered x block
           + 2 * 9 * C_TILE * C * 2         # double-buffered weight tile
           + 2 * C_TILE * HW * 4            # double-buffered out block
           + C_TILE * (H * Wp) * 4          # f32 accumulator
           + 2 * C_TILE * HW * 4)           # conv / centered temporaries

    itemsize = x.dtype.itemsize
    cost = pl.CostEstimate(
        flops=2 * N * 9 * C * C * HW,
        transcendentals=N * C,                        # one rsqrt per (n, c)
        bytes_accessed=2 * N * C * HW * itemsize + 9 * C * C * 2,
    )

    out_flat = pl.pallas_call(
        kernel,
        out_shape=jax.ShapeDtypeStruct((N, C, HW), x.dtype),
        grid_spec=grid_spec,
        compiler_params=pltpu.CompilerParams(
            dimension_semantics=("parallel", "arbitrary"),
            vmem_limit_bytes=_pick_vmem_limit_bytes(est),
        ),
        cost_estimate=cost,
    )(xf, w9)
    return out_flat.reshape(N, C, H, W)


def resnet_block_reference(x, w, b):
    """Plain-JAX reference matching the PyTorch forward (f32 conv, with bias)."""
    xpad = jnp.pad(x, ((0, 0), (0, 0), (1, 1), (1, 1)), mode="reflect")
    conv = jax.lax.conv_general_dilated(
        xpad, w, window_strides=(1, 1), padding="VALID",
        dimension_numbers=("NCHW", "OIHW", "NCHW"))
    conv = conv + b[None, :, None, None]
    mean = conv.mean(axis=(2, 3), keepdims=True)
    var = ((conv - mean) ** 2).mean(axis=(2, 3), keepdims=True)
    normed = (conv - mean) / jnp.sqrt(var + EPS)
    return x + normed


if __name__ == "__main__":
    N, C, H, W = 2, 4, 16, 16

    key = jax.random.PRNGKey(0)
    kx, kw, kb = jax.random.split(key, 3)
    x = jax.random.normal(kx, (N, C, H, W), dtype=jnp.float32)
    # Deterministic synthetic conv params (shapes from nn.Conv2d(dim, dim, 3)).
    w = jax.random.normal(kw, (C, C, 3, 3), dtype=jnp.float32) * 0.1
    b = jax.random.normal(kb, (C,), dtype=jnp.float32) * 0.1

    # Weight packing hoisted out of the per-call path (done once per model load).
    w9 = pack_resnet_block_weights(w)

    out = jax.block_until_ready(resnet_block_forward(x, w9))
    ref = jax.block_until_ready(resnet_block_reference(x, w, b))

    assert out.shape == (N, C, H, W)
    # bf16 MXU inputs (f32 accumulate) vs the pure-f32 reference; the instance
    # norm renormalizes, so the absolute error on the O(1)-scale output stays
    # well inside this tolerance.
    assert jnp.max(jnp.abs(out - ref)) < 5e-2, "mismatch vs reference"
    print("KERNEL_OK")
</pallas_src>

<mosaic_0001>
module attributes {stable_mosaic.version = 11 : i64} {
  func.func @resnet_block_kernel(%arg0: i32, %arg1: i32, %arg2: memref<1x4x256xf32, #tpu.memory_space<vmem>>, %arg3: memref<9x4x4xbf16, #tpu.memory_space<vmem>>, %arg4: memref<1x4x256xf32, #tpu.memory_space<vmem>>, %arg5: memref<4x326xbf16, #tpu.memory_space<vmem>>) attributes {dimension_semantics = [#tpu.dimension_semantics<parallel>, #tpu.dimension_semantics<arbitrary>], iteration_bounds = array<i64: 2, 1>, scalar_prefetch = 0 : i64, scratch_operands = 1 : i64, tpu.core_type = #tpu.core_type<tc>, window_params = [{transform_indices = @transform_0, window_bounds = array<i64: 1, 4, 256>}, {transform_indices = @transform_1, window_bounds = array<i64: 9, 4, 4>}, {transform_indices = @transform_2, window_bounds = array<i64: 1, 4, 256>}]} {
    %c0_i32 = arith.constant 0 : i32
    %0 = arith.cmpi eq, %arg1, %c0_i32 : i32
    %1 = arith.extui %0 : i1 to i32
    %c0_i32_0 = arith.constant 0 : i32
    %2 = arith.cmpi ne, %1, %c0_i32_0 : i32
    scf.if %2 {
      %c0_50 = arith.constant 0 : index
      %c0_51 = arith.constant 0 : index
      %c0_52 = arith.constant 0 : index
      %77 = vector.load %arg2[%c0_50, %c0_51, %c0_52] : memref<1x4x256xf32, #tpu.memory_space<vmem>>, vector<1x4x256xf32>
      %78 = vector.shape_cast %77 : vector<1x4x256xf32> to vector<4x256xf32>
      %79 = arith.truncf %78 : vector<4x256xf32> to vector<4x256xbf16>
      %80 = vector.extract_strided_slice %79 {offsets = [0, 16], sizes = [4, 16], strides = [1, 1]} : vector<4x256xbf16> to vector<4x16xbf16>
      %81 = vector.extract_strided_slice %80 {offsets = [0, 1], sizes = [4, 1], strides = [1, 1]} : vector<4x16xbf16> to vector<4x1xbf16>
      %82 = vector.extract_strided_slice %80 {offsets = [0, 14], sizes = [4, 1], strides = [1, 1]} : vector<4x16xbf16> to vector<4x1xbf16>
      %83 = tpu.concatenate %81, %80, %82 in 1 : vector<4x1xbf16>, vector<4x16xbf16>, vector<4x1xbf16> -> vector<4x18xbf16>
      %c0_53 = arith.constant 0 : index
      %c0_54 = arith.constant 0 : index
      %84 = vector.load %arg5[%c0_53, %c0_54] : memref<4x326xbf16, #tpu.memory_space<vmem>>, vector<4x18xbf16>
      tpu.vector_store %arg5[%c0_53, %c0_54], %83 {strides = array<i32>} : memref<4x326xbf16, #tpu.memory_space<vmem>>, vector<4x18xbf16>,
      %85 = vector.extract_strided_slice %79 {offsets = [0, 0], sizes = [4, 16], strides = [1, 1]} : vector<4x256xbf16> to vector<4x16xbf16>
      %86 = vector.extract_strided_slice %85 {offsets = [0, 1], sizes = [4, 1], strides = [1, 1]} : vector<4x16xbf16> to vector<4x1xbf16>
      %87 = vector.extract_strided_slice %85 {offsets = [0, 14], sizes = [4, 1], strides = [1, 1]} : vector<4x16xbf16> to vector<4x1xbf16>
      %88 = tpu.concatenate %86, %85, %87 in 1 : vector<4x1xbf16>, vector<4x16xbf16>, vector<4x1xbf16> -> vector<4x18xbf16>
      %c0_55 = arith.constant 0 : index
      %c18_56 = arith.constant 18 : index
      %89 = vector.load %arg5[%c0_55, %c18_56] : memref<4x326xbf16, #tpu.memory_space<vmem>>, vector<4x18xbf16>
      tpu.vector_store %arg5[%c0_55, %c18_56], %88 {strides = array<i32>} : memref<4x326xbf16, #tpu.memory_space<vmem>>, vector<4x18xbf16>,
      %90 = vector.extract_strided_slice %79 {offsets = [0, 16], sizes = [4, 16], strides = [1, 1]} : vector<4x256xbf16> to vector<4x16xbf16>
      %91 = vector.extract_strided_slice %90 {offsets = [0, 1], sizes = [4, 1], strides = [1, 1]} : vector<4x16xbf16> to vector<4x1xbf16>
      %92 = vector.extract_strided_slice %90 {offsets = [0, 14], sizes = [4, 1], strides = [1, 1]} : vector<4x16xbf16> to vector<4x1xbf16>
      %93 = tpu.concatenate %91, %90, %92 in 1 : vector<4x1xbf16>, vector<4x16xbf16>, vector<4x1xbf16> -> vector<4x18xbf16>
      %c0_57 = arith.constant 0 : index
      %c36_58 = arith.constant 36 : index
      %94 = vector.load %arg5[%c0_57, %c36_58] : memref<4x326xbf16, #tpu.memory_space<vmem>>, vector<4x18xbf16>
      tpu.vector_store %arg5[%c0_57, %c36_58], %93 {strides = array<i32>} : memref<4x326xbf16, #tpu.memory_space<vmem>>, vector<4x18xbf16>,
      %95 = vector.extract_strided_slice %79 {offsets = [0, 32], sizes = [4, 16], strides = [1, 1]} : vector<4x256xbf16> to vector<4x16xbf16>
      %96 = vector.extract_strided_slice %95 {offsets = [0, 1], sizes = [4, 1], strides = [1, 1]} : vector<4x16xbf16> to vector<4x1xbf16>
      %97 = vector.extract_strided_slice %95 {offsets = [0, 14], sizes = [4, 1], strides = [1, 1]} : vector<4x16xbf16> to vector<4x1xbf16>
      %98 = tpu.concatenate %96, %95, %97 in 1 : vector<4x1xbf16>, vector<4x16xbf16>, vector<4x1xbf16> -> vector<4x18xbf16>
      %c0_59 = arith.constant 0 : index
      %c54 = arith.constant 54 : index
      %99 = vector.load %arg5[%c0_59, %c54] : memref<4x326xbf16, #tpu.memory_space<vmem>>, vector<4x18xbf16>
      tpu.vector_store %arg5[%c0_59, %c54], %98 {strides = array<i32>} : memref<4x326xbf16, #tpu.memory_space<vmem>>, vector<4x18xbf16>,
      %100 = vector.extract_strided_slice %79 {offsets = [0, 48], sizes = [4, 16], strides = [1, 1]} : vector<4x256xbf16> to vector<4x16xbf16>
      %101 = vector.extract_strided_slice %100 {offsets = [0, 1], sizes = [4, 1], strides = [1, 1]} : vector<4x16xbf16> to vector<4x1xbf16>
      %102 = vector.extract_strided_slice %100 {offsets = [0, 14], sizes = [4, 1], strides = [1, 1]} : vector<4x16xbf16> to vector<4x1xbf16>
      %103 = tpu.concatenate %101, %100, %102 in 1 : vector<4x1xbf16>, vector<4x16xbf16>, vector<4x1xbf16> -> vector<4x18xbf16>
      %c0_60 = arith.constant 0 : index
      %c72 = arith.constant 72 : index
      %104 = vector.load %arg5[%c0_60, %c72] : memref<4x326xbf16, #tpu.memory_space<vmem>>, vector<4x18xbf16>
      tpu.vector_store %arg5[%c0_60, %c72], %103 {strides = array<i32>} : memref<4x326xbf16, #tpu.memory_space<vmem>>, vector<4x18xbf16>,
      %105 = vector.extract_strided_slice %79 {offsets = [0, 64], sizes = [4, 16], strides = [1, 1]} : vector<4x256xbf16> to vector<4x16xbf16>
      %106 = vector.extract_strided_slice %105 {offsets = [0, 1], sizes = [4, 1], strides = [1, 1]} : vector<4x16xbf16> to vector<4x1xbf16>
      %107 = vector.extract_strided_slice %105 {offsets = [0, 14], sizes = [4, 1], strides = [1, 1]} : vector<4x16xbf16> to vector<4x1xbf16>
      %108 = tpu.concatenate %106, %105, %107 in 1 : vector<4x1xbf16>, vector<4x16xbf16>, vector<4x1xbf16> -> vector<4x18xbf16>
      %c0_61 = arith.constant 0 : index
      %c90 = arith.constant 90 : index
      %109 = vector.load %arg5[%c0_61, %c90] : memref<4x326xbf16, #tpu.memory_space<vmem>>, vector<4x18xbf16>
      tpu.vector_store %arg5[%c0_61, %c90], %108 {strides = array<i32>} : memref<4x326xbf16, #tpu.memory_space<vmem>>, vector<4x18xbf16>,
      %110 = vector.extract_strided_slice %79 {offsets = [0, 80], sizes = [4, 16], strides = [1, 1]} : vector<4x256xbf16> to vector<4x16xbf16>
      %111 = vector.extract_strided_slice %110 {offsets = [0, 1], sizes = [4, 1], strides = [1, 1]} : vector<4x16xbf16> to vector<4x1xbf16>
      %112 = vector.extract_strided_slice %110 {offsets = [0, 14], sizes = [4, 1], strides = [1, 1]} : vector<4x16xbf16> to vector<4x1xbf16>
      %113 = tpu.concatenate %111, %110, %112 in 1 : vector<4x1xbf16>, vector<4x16xbf16>, vector<4x1xbf16> -> vector<4x18xbf16>
      %c0_62 = arith.constant 0 : index
      %c108 = arith.constant 108 : index
      %114 = vector.load %arg5[%c0_62, %c108] : memref<4x326xbf16, #tpu.memory_space<vmem>>, vector<4x18xbf16>
      tpu.vector_store %arg5[%c0_62, %c108], %113 {strides = array<i32>} : memref<4x326xbf16, #tpu.memory_space<vmem>>, vector<4x18xbf16>,
      %115 = vector.extract_strided_slice %79 {offsets = [0, 96], sizes = [4, 16], strides = [1, 1]} : vector<4x256xbf16> to vector<4x16xbf16>
      %116 = vector.extract_strided_slice %115 {offsets = [0, 1], sizes = [4, 1], strides = [1, 1]} : vector<4x16xbf16> to vector<4x1xbf16>
      %117 = vector.extract_strided_slice %115 {offsets = [0, 14], sizes = [4, 1], strides = [1, 1]} : vector<4x16xbf16> to vector<4x1xbf16>
      %118 = tpu.concatenate %116, %115, %117 in 1 : vector<4x1xbf16>, vector<4x16xbf16>, vector<4x1xbf16> -> vector<4x18xbf16>
      %c0_63 = arith.constant 0 : index
      %c126 = arith.constant 126 : index
      %119 = vector.load %arg5[%c0_63, %c126] : memref<4x326xbf16, #tpu.memory_space<vmem>>, vector<4x18xbf16>
      tpu.vector_store %arg5[%c0_63, %c126], %118 {strides = array<i32>} : memref<4x326xbf16, #tpu.memory_space<vmem>>, vector<4x18xbf16>,
      %120 = vector.extract_strided_slice %79 {offsets = [0, 112], sizes = [4, 16], strides = [1, 1]} : vector<4x256xbf16> to vector<4x16xbf16>
      %121 = vector.extract_strided_slice %120 {offsets = [0, 1], sizes = [4, 1], strides = [1, 1]} : vector<4x16xbf16> to vector<4x1xbf16>
      %122 = vector.extract_strided_slice %120 {offsets = [0, 14], sizes = [4, 1], strides = [1, 1]} : vector<4x16xbf16> to vector<4x1xbf16>
      %123 = tpu.concatenate %121, %120, %122 in 1 : vector<4x1xbf16>, vector<4x16xbf16>, vector<4x1xbf16> -> vector<4x18xbf16>
      %c0_64 = arith.constant 0 : index
      %c144 = arith.constant 144 : index
      %124 = vector.load %arg5[%c0_64, %c144] : memref<4x326xbf16, #tpu.memory_space<vmem>>, vector<4x18xbf16>
      tpu.vector_store %arg5[%c0_64, %c144], %123 {strides = array<i32>} : memref<4x326xbf16, #tpu.memory_space<vmem>>, vector<4x18xbf16>,
      %125 = vector.extract_strided_slice %79 {offsets = [0, 128], sizes = [4, 16], strides = [1, 1]} : vector<4x256xbf16> to vector<4x16xbf16>
      %126 = vector.extract_strided_slice %125 {offsets = [0, 1], sizes = [4, 1], strides = [1, 1]} : vector<4x16xbf16> to vector<4x1xbf16>
      %127 = vector.extract_strided_slice %125 {offsets = [0, 14], sizes = [4, 1], strides = [1, 1]} : vector<4x16xbf16> to vector<4x1xbf16>
      %128 = tpu.concatenate %126, %125, %127 in 1 : vector<4x1xbf16>, vector<4x16xbf16>, vector<4x1xbf16> -> vector<4x18xbf16>
      %c0_65 = arith.constant 0 : index
      %c162 = arith.constant 162 : index
      %129 = vector.load %arg5[%c0_65, %c162] : memref<4x326xbf16, #tpu.memory_space<vmem>>, vector<4x18xbf16>
      tpu.vector_store %arg5[%c0_65, %c162], %128 {strides = array<i32>} : memref<4x326xbf16, #tpu.memory_space<vmem>>, vector<4x18xbf16>,
      %130 = vector.extract_strided_slice %79 {offsets = [0, 144], sizes = [4, 16], strides = [1, 1]} : vector<4x256xbf16> to vector<4x16xbf16>
      %131 = vector.extract_strided_slice %130 {offsets = [0, 1], sizes = [4, 1], strides = [1, 1]} : vector<4x16xbf16> to vector<4x1xbf16>
      %132 = vector.extract_strided_slice %130 {offsets = [0, 14], sizes = [4, 1], strides = [1, 1]} : vector<4x16xbf16> to vector<4x1xbf16>
      %133 = tpu.concatenate %131, %130, %132 in 1 : vector<4x1xbf16>, vector<4x16xbf16>, vector<4x1xbf16> -> vector<4x18xbf16>
      %c0_66 = arith.constant 0 : index
      %c180 = arith.constant 180 : index
      %134 = vector.load %arg5[%c0_66, %c180] : memref<4x326xbf16, #tpu.memory_space<vmem>>, vector<4x18xbf16>
      tpu.vector_store %arg5[%c0_66, %c180], %133 {strides = array<i32>} : memref<4x326xbf16, #tpu.memory_space<vmem>>, vector<4x18xbf16>,
      %135 = vector.extract_strided_slice %79 {offsets = [0, 160], sizes = [4, 16], strides = [1, 1]} : vector<4x256xbf16> to vector<4x16xbf16>
      %136 = vector.extract_strided_slice %135 {offsets = [0, 1], sizes = [4, 1], strides = [1, 1]} : vector<4x16xbf16> to vector<4x1xbf16>
      %137 = vector.extract_strided_slice %135 {offsets = [0, 14], sizes = [4, 1], strides = [1, 1]} : vector<4x16xbf16> to vector<4x1xbf16>
      %138 = tpu.concatenate %136, %135, %137 in 1 : vector<4x1xbf16>, vector<4x16xbf16>, vector<4x1xbf16> -> vector<4x18xbf16>
      %c0_67 = arith.constant 0 : index
      %c198 = arith.constant 198 : index
      %139 = vector.load %arg5[%c0_67, %c198] : memref<4x326xbf16, #tpu.memory_space<vmem>>, vector<4x18xbf16>
      tpu.vector_store %arg5[%c0_67, %c198], %138 {strides = array<i32>} : memref<4x326xbf16, #tpu.memory_space<vmem>>, vector<4x18xbf16>,
      %140 = vector.extract_strided_slice %79 {offsets = [0, 176], sizes = [4, 16], strides = [1, 1]} : vector<4x256xbf16> to vector<4x16xbf16>
      %141 = vector.extract_strided_slice %140 {offsets = [0, 1], sizes = [4, 1], strides = [1, 1]} : vector<4x16xbf16> to vector<4x1xbf16>
      %142 = vector.extract_strided_slice %140 {offsets = [0, 14], sizes = [4, 1], strides = [1, 1]} : vector<4x16xbf16> to vector<4x1xbf16>
      %143 = tpu.concatenate %141, %140, %142 in 1 : vector<4x1xbf16>, vector<4x16xbf16>, vector<4x1xbf16> -> vector<4x18xbf16>
      %c0_68 = arith.constant 0 : index
      %c216 = arith.constant 216 : index
      %144 = vector.load %arg5[%c0_68, %c216] : memref<4x326xbf16, #tpu.memory_space<vmem>>, vector<4x18xbf16>
      tpu.vector_store %arg5[%c0_68, %c216], %143 {strides = array<i32>} : memref<4x326xbf16, #tpu.memory_space<vmem>>, vector<4x18xbf16>,
      %145 = vector.extract_strided_slice %79 {offsets = [0, 192], sizes = [4, 16], strides = [1, 1]} : vector<4x256xbf16> to vector<4x16xbf16>
      %146 = vector.extract_strided_slice %145 {offsets = [0, 1], sizes = [4, 1], strides = [1, 1]} : vector<4x16xbf16> to vector<4x1xbf16>
      %147 = vector.extract_strided_slice %145 {offsets = [0, 14], sizes = [4, 1], strides = [1, 1]} : vector<4x16xbf16> to vector<4x1xbf16>
      %148 = tpu.concatenate %146, %145, %147 in 1 : vector<4x1xbf16>, vector<4x16xbf16>, vector<4x1xbf16> -> vector<4x18xbf16>
      %c0_69 = arith.constant 0 : index
      %c234 = arith.constant 234 : index
      %149 = vector.load %arg5[%c0_69, %c234] : memref<4x326xbf16, #tpu.memory_space<vmem>>, vector<4x18xbf16>
      tpu.vector_store %arg5[%c0_69, %c234], %148 {strides = array<i32>} : memref<4x326xbf16, #tpu.memory_space<vmem>>, vector<4x18xbf16>,
      %150 = vector.extract_strided_slice %79 {offsets = [0, 208], sizes = [4, 16], strides = [1, 1]} : vector<4x256xbf16> to vector<4x16xbf16>
      %151 = vector.extract_strided_slice %150 {offsets = [0, 1], sizes = [4, 1], strides = [1, 1]} : vector<4x16xbf16> to vector<4x1xbf16>
      %152 = vector.extract_strided_slice %150 {offsets = [0, 14], sizes = [4, 1], strides = [1, 1]} : vector<4x16xbf16> to vector<4x1xbf16>
      %153 = tpu.concatenate %151, %150, %152 in 1 : vector<4x1xbf16>, vector<4x16xbf16>, vector<4x1xbf16> -> vector<4x18xbf16>
      %c0_70 = arith.constant 0 : index
      %c252 = arith.constant 252 : index
      %154 = vector.load %arg5[%c0_70, %c252] : memref<4x326xbf16, #tpu.memory_space<vmem>>, vector<4x18xbf16>
      tpu.vector_store %arg5[%c0_70, %c252], %153 {strides = array<i32>} : memref<4x326xbf16, #tpu.memory_space<vmem>>, vector<4x18xbf16>,
      %155 = vector.extract_strided_slice %79 {offsets = [0, 224], sizes = [4, 16], strides = [1, 1]} : vector<4x256xbf16> to vector<4x16xbf16>
      %156 = vector.extract_strided_slice %155 {offsets = [0, 1], sizes = [4, 1], strides = [1, 1]} : vector<4x16xbf16> to vector<4x1xbf16>
      %157 = vector.extract_strided_slice %155 {offsets = [0, 14], sizes = [4, 1], strides = [1, 1]} : vector<4x16xbf16> to vector<4x1xbf16>
      %158 = tpu.concatenate %156, %155, %157 in 1 : vector<4x1xbf16>, vector<4x16xbf16>, vector<4x1xbf16> -> vector<4x18xbf16>
      %c0_71 = arith.constant 0 : index
      %c270 = arith.constant 270 : index
      %159 = vector.load %arg5[%c0_71, %c270] : memref<4x326xbf16, #tpu.memory_space<vmem>>, vector<4x18xbf16>
      tpu.vector_store %arg5[%c0_71, %c270], %158 {strides = array<i32>} : memref<4x326xbf16, #tpu.memory_space<vmem>>, vector<4x18xbf16>,
      %160 = vector.extract_strided_slice %79 {offsets = [0, 240], sizes = [4, 16], strides = [1, 1]} : vector<4x256xbf16> to vector<4x16xbf16>
      %161 = vector.extract_strided_slice %160 {offsets = [0, 1], sizes = [4, 1], strides = [1, 1]} : vector<4x16xbf16> to vector<4x1xbf16>
      %162 = vector.extract_strided_slice %160 {offsets = [0, 14], sizes = [4, 1], strides = [1, 1]} : vector<4x16xbf16> to vector<4x1xbf16>
      %163 = tpu.concatenate %161, %160, %162 in 1 : vector<4x1xbf16>, vector<4x16xbf16>, vector<4x1xbf16> -> vector<4x18xbf16>
      %c0_72 = arith.constant 0 : index
      %c288 = arith.constant 288 : index
      %164 = vector.load %arg5[%c0_72, %c288] : memref<4x326xbf16, #tpu.memory_space<vmem>>, vector<4x18xbf16>
      tpu.vector_store %arg5[%c0_72, %c288], %163 {strides = array<i32>} : memref<4x326xbf16, #tpu.memory_space<vmem>>, vector<4x18xbf16>,
      %165 = vector.extract_strided_slice %79 {offsets = [0, 224], sizes = [4, 16], strides = [1, 1]} : vector<4x256xbf16> to vector<4x16xbf16>
      %166 = vector.extract_strided_slice %165 {offsets = [0, 1], sizes = [4, 1], strides = [1, 1]} : vector<4x16xbf16> to vector<4x1xbf16>
      %167 = vector.extract_strided_slice %165 {offsets = [0, 14], sizes = [4, 1], strides = [1, 1]} : vector<4x16xbf16> to vector<4x1xbf16>
      %168 = tpu.concatenate %166, %165, %167 in 1 : vector<4x1xbf16>, vector<4x16xbf16>, vector<4x1xbf16> -> vector<4x18xbf16>
      %c0_73 = arith.constant 0 : index
      %c306 = arith.constant 306 : index
      %169 = vector.load %arg5[%c0_73, %c306] : memref<4x326xbf16, #tpu.memory_space<vmem>>, vector<4x18xbf16>
      tpu.vector_store %arg5[%c0_73, %c306], %168 {strides = array<i32>} : memref<4x326xbf16, #tpu.memory_space<vmem>>, vector<4x18xbf16>,
      %cst_74 = arith.constant 0.000000e+00 : bf16
      %170 = vector.broadcast %cst_74 : bf16 to vector<4x2xbf16>
      %c0_75 = arith.constant 0 : index
      %c324 = arith.constant 324 : index
      %171 = vector.load %arg5[%c0_75, %c324] : memref<4x326xbf16, #tpu.memory_space<vmem>>, vector<4x2xbf16>
      tpu.vector_store %arg5[%c0_75, %c324], %170 {strides = array<i32>} : memref<4x326xbf16, #tpu.memory_space<vmem>>, vector<4x2xbf16>,
    } else {
    }
    %cst = arith.constant 0.000000e+00 : f32
    %3 = vector.broadcast %cst : f32 to vector<4x288xf32>
    %c0 = arith.constant 0 : index
    %c0_1 = arith.constant 0 : index
    %c0_2 = arith.constant 0 : index
    %4 = vector.load %arg3[%c0, %c0_1, %c0_2] : memref<9x4x4xbf16, #tpu.memory_space<vmem>>, vector<1x4x4xbf16>
    %5 = vector.shape_cast %4 : vector<1x4x4xbf16> to vector<4x4xbf16>
    %c0_3 = arith.constant 0 : index
    %c0_4 = arith.constant 0 : index
    %6 = vector.load %arg5[%c0_3, %c0_4] : memref<4x326xbf16, #tpu.memory_space<vmem>>, vector<4x288xbf16>
    %cst_5 = arith.constant dense<0.000000e+00> : vector<4x288xf32>
    %7 = tpu.matmul %5, %6, %cst_5 {dimension_numbers = #tpu.dot_dimension_numbers<[1], [0], [0], [1], [0, 0, 1, 1], [], []>} : vector<4x4xbf16>, vector<4x288xbf16>, vector<4x288xf32> -> vector<4x288xf32>
    %8 = arith.addf %3, %7 : vector<4x288xf32>
    %c1 = arith.constant 1 : index
    %c0_6 = arith.constant 0 : index
    %c0_7 = arith.constant 0 : index
    %9 = vector.load %arg3[%c1, %c0_6, %c0_7] : memref<9x4x4xbf16, #tpu.memory_space<vmem>>, vector<1x4x4xbf16>
    %10 = vector.shape_cast %9 : vector<1x4x4xbf16> to vector<4x4xbf16>
    %c0_8 = arith.constant 0 : index
    %c1_9 = arith.constant 1 : index
    %11 = vector.load %arg5[%c0_8, %c1_9] : memref<4x326xbf16, #tpu.memory_space<vmem>>, vector<4x288xbf16>
    %cst_10 = arith.constant dense<0.000000e+00> : vector<4x288xf32>
    %12 = tpu.matmul %10, %11, %cst_10 {dimension_numbers = #tpu.dot_dimension_numbers<[1], [0], [0], [1], [0, 0, 1, 1], [], []>} : vector<4x4xbf16>, vector<4x288xbf16>, vector<4x288xf32> -> vector<4x288xf32>
    %13 = arith.addf %8, %12 : vector<4x288xf32>
    %c2 = arith.constant 2 : index
    %c0_11 = arith.constant 0 : index
    %c0_12 = arith.constant 0 : index
    %14 = vector.load %arg3[%c2, %c0_11, %c0_12] : memref<9x4x4xbf16, #tpu.memory_space<vmem>>, vector<1x4x4xbf16>
    %15 = vector.shape_cast %14 : vector<1x4x4xbf16> to vector<4x4xbf16>
    %c0_13 = arith.constant 0 : index
    %c2_14 = arith.constant 2 : index
    %16 = vector.load %arg5[%c0_13, %c2_14] : memref<4x326xbf16, #tpu.memory_space<vmem>>, vector<4x288xbf16>
    %cst_15 = arith.constant dense<0.000000e+00> : vector<4x288xf32>
    %17 = tpu.matmul %15, %16, %cst_15 {dimension_numbers = #tpu.dot_dimension_numbers<[1], [0], [0], [1], [0, 0, 1, 1], [], []>} : vector<4x4xbf16>, vector<4x288xbf16>, vector<4x288xf32> -> vector<4x288xf32>
    %18 = arith.addf %13, %17 : vector<4x288xf32>
    %c3 = arith.constant 3 : index
    %c0_16 = arith.constant 0 : index
    %c0_17 = arith.constant 0 : index
    %19 = vector.load %arg3[%c3, %c0_16, %c0_17] : memref<9x4x4xbf16, #tpu.memory_space<vmem>>, vector<1x4x4xbf16>
    %20 = vector.shape_cast %19 : vector<1x4x4xbf16> to vector<4x4xbf16>
    %c0_18 = arith.constant 0 : index
    %c18 = arith.constant 18 : index
    %21 = vector.load %arg5[%c0_18, %c18] : memref<4x326xbf16, #tpu.memory_space<vmem>>, vector<4x288xbf16>
    %cst_19 = arith.constant dense<0.000000e+00> : vector<4x288xf32>
    %22 = tpu.matmul %20, %21, %cst_19 {dimension_numbers = #tpu.dot_dimension_numbers<[1], [0], [0], [1], [0, 0, 1, 1], [], []>} : vector<4x4xbf16>, vector<4x288xbf16>, vector<4x288xf32> -> vector<4x288xf32>
    %23 = arith.addf %18, %22 : vector<4x288xf32>
    %c4 = arith.constant 4 : index
    %c0_20 = arith.constant 0 : index
    %c0_21 = arith.constant 0 : index
    %24 = vector.load %arg3[%c4, %c0_20, %c0_21] : memref<9x4x4xbf16, #tpu.memory_space<vmem>>, vector<1x4x4xbf16>
    %25 = vector.shape_cast %24 : vector<1x4x4xbf16> to vector<4x4xbf16>
    %c0_22 = arith.constant 0 : index
    %c19 = arith.constant 19 : index
    %26 = vector.load %arg5[%c0_22, %c19] : memref<4x326xbf16, #tpu.memory_space<vmem>>, vector<4x288xbf16>
    %cst_23 = arith.constant dense<0.000000e+00> : vector<4x288xf32>
    %27 = tpu.matmul %25, %26, %cst_23 {dimension_numbers = #tpu.dot_dimension_numbers<[1], [0], [0], [1], [0, 0, 1, 1], [], []>} : vector<4x4xbf16>, vector<4x288xbf16>, vector<4x288xf32> -> vector<4x288xf32>
    %28 = arith.addf %23, %27 : vector<4x288xf32>
    %c5 = arith.constant 5 : index
    %c0_24 = arith.constant 0 : index
    %c0_25 = arith.constant 0 : index
    %29 = vector.load %arg3[%c5, %c0_24, %c0_25] : memref<9x4x4xbf16, #tpu.memory_space<vmem>>, vector<1x4x4xbf16>
    %30 = vector.shape_cast %29 : vector<1x4x4xbf16> to vector<4x4xbf16>
    %c0_26 = arith.constant 0 : index
    %c20 = arith.constant 20 : index
    %31 = vector.load %arg5[%c0_26, %c20] : memref<4x326xbf16, #tpu.memory_space<vmem>>, vector<4x288xbf16>
    %cst_27 = arith.constant dense<0.000000e+00> : vector<4x288xf32>
    %32 = tpu.matmul %30, %31, %cst_27 {dimension_numbers = #tpu.dot_dimension_numbers<[1], [0], [0], [1], [0, 0, 1, 1], [], []>} : vector<4x4xbf16>, vector<4x288xbf16>, vector<4x288xf32> -> vector<4x288xf32>
    %33 = arith.addf %28, %32 : vector<4x288xf32>
    %c6 = arith.constant 6 : index
    %c0_28 = arith.constant 0 : index
    %c0_29 = arith.constant 0 : index
    %34 = vector.load %arg3[%c6, %c0_28, %c0_29] : memref<9x4x4xbf16, #tpu.memory_space<vmem>>, vector<1x4x4xbf16>
    %35 = vector.shape_cast %34 : vector<1x4x4xbf16> to vector<4x4xbf16>
    %c0_30 = arith.constant 0 : index
    %c36 = arith.constant 36 : index
    %36 = vector.load %arg5[%c0_30, %c36] : memref<4x326xbf16, #tpu.memory_space<vmem>>, vector<4x288xbf16>
    %cst_31 = arith.constant dense<0.000000e+00> : vector<4x288xf32>
    %37 = tpu.matmul %35, %36, %cst_31 {dimension_numbers = #tpu.dot_dimension_numbers<[1], [0], [0], [1], [0, 0, 1, 1], [], []>} : vector<4x4xbf16>, vector<4x288xbf16>, vector<4x288xf32> -> vector<4x288xf32>
    %38 = arith.addf %33, %37 : vector<4x288xf32>
    %c7 = arith.constant 7 : index
    %c0_32 = arith.constant 0 : index
    %c0_33 = arith.constant 0 : index
    %39 = vector.load %arg3[%c7, %c0_32, %c0_33] : memref<9x4x4xbf16, #tpu.memory_space<vmem>>, vector<1x4x4xbf16>
    %40 = vector.shape_cast %39 : vector<1x4x4xbf16> to vector<4x4xbf16>
    %c0_34 = arith.constant 0 : index
    %c37 = arith.constant 37 : index
    %41 = vector.load %arg5[%c0_34, %c37] : memref<4x326xbf16, #tpu.memory_space<vmem>>, vector<4x288xbf16>
    %cst_35 = arith.constant dense<0.000000e+00> : vector<4x288xf32>
    %42 = tpu.matmul %40, %41, %cst_35 {dimension_numbers = #tpu.dot_dimension_numbers<[1], [0], [0], [1], [0, 0, 1, 1], [], []>} : vector<4x4xbf16>, vector<4x288xbf16>, vector<4x288xf32> -> vector<4x288xf32>
    %43 = arith.addf %38, %42 : vector<4x288xf32>
    %c8 = arith.constant 8 : index
    %c0_36 = arith.constant 0 : index
    %c0_37 = arith.constant 0 : index
    %44 = vector.load %arg3[%c8, %c0_36, %c0_37] : memref<9x4x4xbf16, #tpu.memory_space<vmem>>, vector<1x4x4xbf16>
    %45 = vector.shape_cast %44 : vector<1x4x4xbf16> to vector<4x4xbf16>
    %c0_38 = arith.constant 0 : index
    %c38 = arith.constant 38 : index
    %46 = vector.load %arg5[%c0_38, %c38] : memref<4x326xbf16, #tpu.memory_space<vmem>>, vector<4x288xbf16>
    %cst_39 = arith.constant dense<0.000000e+00> : vector<4x288xf32>
    %47 = tpu.matmul %45, %46, %cst_39 {dimension_numbers = #tpu.dot_dimension_numbers<[1], [0], [0], [1], [0, 0, 1, 1], [], []>} : vector<4x4xbf16>, vector<4x288xbf16>, vector<4x288xf32> -> vector<4x288xf32>
    %48 = arith.addf %43, %47 : vector<4x288xf32>
    %49 = vector.shape_cast %48 : vector<4x288xf32> to vector<4x16x18xf32>
    %50 = vector.extract_strided_slice %49 {offsets = [0, 0, 0], sizes = [4, 16, 16], strides = [1, 1, 1]} : vector<4x16x18xf32> to vector<4x16x16xf32>
    %51 = vector.shape_cast %50 : vector<4x16x16xf32> to vector<4x256xf32>
    %cst_40 = arith.constant dense<0.000000e+00> : vector<4xf32>
    %52 = vector.multi_reduction <add>, %51, %cst_40 [1] : vector<4x256xf32> to vector<4xf32>
    %53 = vector.shape_cast %52 : vector<4xf32> to vector<4x1xf32>
    %cst_41 = arith.constant 3.906250e-03 : f32
    %54 = vector.broadcast %cst_41 : f32 to vector<4x1xf32>
    %55 = arith.mulf %53, %54 : vector<4x1xf32>
    %56 = vector.broadcast %55 : vector<4x1xf32> to vector<4x256xf32>
    %57 = arith.subf %51, %56 : vector<4x256xf32>
    %58 = arith.mulf %57, %57 : vector<4x256xf32>
    %cst_42 = arith.constant dense<0.000000e+00> : vector<4xf32>
    %59 = vector.multi_reduction <add>, %58, %cst_42 [1] : vector<4x256xf32> to vector<4xf32>
    %60 = vector.shape_cast %59 : vector<4xf32> to vector<4x1xf32>
    %cst_43 = arith.constant 3.906250e-03 : f32
    %61 = vector.broadcast %cst_43 : f32 to vector<4x1xf32>
    %62 = arith.mulf %60, %61 : vector<4x1xf32>
    %cst_44 = arith.constant 9.99999974E-6 : f32
    %63 = vector.broadcast %cst_44 : f32 to vector<4x1xf32>
    %64 = arith.addf %62, %63 : vector<4x1xf32>
    %65 = math.rsqrt %64 : vector<4x1xf32>
    %c4_i32 = arith.constant 4 : i32
    %66 = arith.muli %arg1, %c4_i32 : i32
    %67 = tpu.assume_multiple %66, 4 : i32
    %c0_45 = arith.constant 0 : index
    %68 = arith.index_cast %67 : i32 to index
    %c0_46 = arith.constant 0 : index
    %69 = vector.load %arg2[%c0_45, %68, %c0_46] : memref<1x4x256xf32, #tpu.memory_space<vmem>>, vector<1x4x256xf32>
    %70 = vector.shape_cast %69 : vector<1x4x256xf32> to vector<4x256xf32>
    %71 = vector.broadcast %65 : vector<4x1xf32> to vector<4x256xf32>
    %72 = arith.mulf %57, %71 : vector<4x256xf32>
    %73 = arith.addf %70, %72 : vector<4x256xf32>
    %c0_47 = arith.constant 0 : index
    %c0_48 = arith.constant 0 : index
    %c0_49 = arith.constant 0 : index
    %74 = vector.load %arg4[%c0_47, %c0_48, %c0_49] : memref<1x4x256xf32, #tpu.memory_space<vmem>>, vector<1x4x256xf32>
    %75 = vector.shape_cast %74 : vector<1x4x256xf32> to vector<4x256xf32>
    %76 = vector.shape_cast %73 : vector<4x256xf32> to vector<1x4x256xf32>
    tpu.vector_store %arg4[%c0_47, %c0_48, %c0_49], %76 {strides = array<i32>} : memref<1x4x256xf32, #tpu.memory_space<vmem>>, vector<1x4x256xf32>,
    return
  }
  func.func @transform_0(%arg0: i32, %arg1: i32) -> (i32, i32, i32) {
    %c0_i32 = arith.constant 0 : i32
    %c0_i32_0 = arith.constant 0 : i32
    %c0_i32_1 = arith.constant 0 : i32
    return %arg0, %c0_i32, %c0_i32_0 : i32, i32, i32
  }
  func.func @transform_1(%arg0: i32, %arg1: i32) -> (i32, i32, i32) {
    %c0_i32 = arith.constant 0 : i32
    %c0_i32_0 = arith.constant 0 : i32
    %c0_i32_1 = arith.constant 0 : i32
    return %c0_i32, %arg1, %c0_i32_0 : i32, i32, i32
  }
  func.func @transform_2(%arg0: i32, %arg1: i32) -> (i32, i32, i32) {
    %c0_i32 = arith.constant 0 : i32
    %c0_i32_0 = arith.constant 0 : i32
    return %arg0, %arg1, %c0_i32 : i32, i32, i32
  }
}

</mosaic_0001>

<llo_original>
// kernel: tpu_custom_call.1
$region0: #{tpu_custom_call.1}
  #allocation0 [shape = 'u32[]', space=smem, size = 0x4, offset = 0x4, fixed_abs, tag = 'smem constant byte address 0x4 - core index']
  #allocation1 [shape = 'u32[72,128]{1,0:T(1,128)}', space=vmem, size = 0x9000, scoped, tag = 'internal scratch']
  #allocation2 [shape = 'bf16[4,326]{1,0:T(4,128)(2,1)}', space=vmem, size = 0xc00, scoped, tag = 'scratch operand']
  %s0 = inlined_call_operand.vmem [shape: f32[2,4,256], index: 0, kind: input, shape index: {}]
  %s1 = inlined_call_operand.vmem [shape: bf16[9,4,4], index: 1, kind: input, shape index: {}]
  %s2 = inlined_call_operand.hbm [shape: f32[2,4,256], index: 2, kind: output, shape index: {}]
  %s3 = sld [smem:[#allocation0]]
  $region45: #{tpu_custom_call.1} parent=0
    _
  %s5 = ssub.s32 1, %s3
  %s6 = scalar_select 0, %s5, %s3
  $region1: #{tpu_custom_call.1} parent=0
    #allocation3 [shape = 'u8[8192]{0}', space=vmem, size = 0x2000, scoped, tag = 'output window, operand 0']
    #allocation4 [shape = 's32[2]{0}', space=sflag, size = 0x8, scoped, tag = 'scoped memory for tpu_custom_call.1']
    %7 = vsyncpa [#allocation4], 0
    %s8 = scalar_lea.sflag [#allocation4], 1
    %9 = vsyncpa %s8, 0
    loop: start=0, step=1, limit=4
    $region2: #{tpu_custom_call.1} parent=1 // loop_pre_header
      _
    $region3: #{tpu_custom_call.1} parent=1 // loop_header
      %s11 = sphi 0, %s15
      %p12 = scmp.ge.s32.totalorder %s11, 4
      %s18 = sphi 0, %s30
      %s19 = sphi 0, %s26
      %s20 = sphi 0, %s18
      %s21 = sphi 0, %s19
      %s22 = sphi 0, %s20
      %s23 = sphi 0, %s21
      %s33 = sphi 0, %s35
      %s36 = sphi 0, %s33
      %s37 = sphi 0, %s36
      %s53 = sphi 0, %s37
      %s59 = sphi 0, %s61
      %s62 = sphi 0, %s59
      %s63 = sphi 0, %s62
      %s79 = sphi 0, %s63
      %s87 = sphi 0, %s89
      %s90 = sphi 0, %s87
      %s91 = sphi 0, %s90
      %s107 = sphi 0, %s91
    $region4: #{tpu_custom_call.1} parent=1 // loop_header_branch
      %14 = sbr.rel (%p12) target = $region8
    $region5: #{tpu_custom_call.1} parent=1 // loop_body
      %s16 = ssub.s32 %s11, 1
      %s17 = ssub.s32 %s11, 2
      %s24 = sadd.s32 1, %s19
      %p25 = scmp.ge.s32.totalorder %s24, 1
      %s26 = scalar_select %p25, 0, %s24
      %s27 = sadd.s32 1, %s18
      %s28 = scalar_select %p25, %s27, %s18
      %p29 = scmp.ge.s32.totalorder %s28, 2
      %s30 = scalar_select %p29, 0, %s28
      %s31 = ssub.s32 %s18, %s30
      %p32 = scmp.eq.s32.totalorder %s31, 0
      %s34 = sadd.s32 %s33, 1
      %s35 = scalar_select %p32, %s33, %s34
      %p38 = pneg %p32
      %p39 = scmp.eq.s32.totalorder %s11, 1
      %p40 = por %p38, %p39
      %p41 = scmp.ne.s32.totalorder %s33, %s36
      %p42 = scmp.eq.s32.totalorder %s11, 0
      %p43 = por %p41, %p42
      %p44 = scmp.ne.s32.totalorder %s33, %s36
      %p45 = scmp.eq.s32.totalorder %s16, 1
      %p46 = por %p44, %p45
      %p47 = scmp.ne.s32.totalorder %s36, %s37
      %p48 = scmp.eq.s32.totalorder %s16, 0
      %p49 = por %p47, %p48
      %p50 = scmp.ne.s32.totalorder %s36, %s37
      %p51 = scmp.eq.s32.totalorder %s17, 1
      %p52 = por %p50, %p51
      %p54 = scmp.ne.s32.totalorder %s37, %s53
      %p55 = scmp.eq.s32.totalorder %s17, 0
      %p56 = por %p54, %p55
      %s57 = ssub.s32 %s19, %s26
      %p58 = scmp.eq.s32.totalorder %s57, 0
      %s60 = sadd.s32 %s59, 1
      %s61 = scalar_select %p58, %s59, %s60
      %p64 = pneg %p58
      %p65 = scmp.eq.s32.totalorder %s11, 1
      %p66 = por %p64, %p65
      %p67 = scmp.ne.s32.totalorder %s59, %s62
      %p68 = scmp.eq.s32.totalorder %s11, 0
      %p69 = por %p67, %p68
      %p70 = scmp.ne.s32.totalorder %s59, %s62
      %p71 = scmp.eq.s32.totalorder %s16, 1
      %p72 = por %p70, %p71
      %p73 = scmp.ne.s32.totalorder %s62, %s63
      %p74 = scmp.eq.s32.totalorder %s16, 0
      %p75 = por %p73, %p74
      %p76 = scmp.ne.s32.totalorder %s62, %s63
      %p77 = scmp.eq.s32.totalorder %s17, 1
      %p78 = por %p76, %p77
      %p80 = scmp.ne.s32.totalorder %s63, %s79
      %p81 = scmp.eq.s32.totalorder %s17, 0
      %p82 = por %p80, %p81
      %s83 = ssub.s32 %s18, %s30
      %s84 = ssub.s32 %s19, %s26
      %s85 = sor.u32 %s83, %s84
      %p86 = scmp.eq.s32.totalorder %s85, 0
      %s88 = sadd.s32 %s87, 1
      %s89 = scalar_select %p86, %s87, %s88
      %p92 = pneg %p86
      %p93 = scmp.eq.s32.totalorder %s11, 1
      %p94 = por %p92, %p93
      %p95 = scmp.ne.s32.totalorder %s87, %s90
      %p96 = scmp.eq.s32.totalorder %s11, 0
      %p97 = por %p95, %p96
      %p98 = scmp.ne.s32.totalorder %s87, %s90
      %p99 = scmp.eq.s32.totalorder %s16, 1
      %p100 = por %p98, %p99
      %p101 = scmp.ne.s32.totalorder %s90, %s91
      %p102 = scmp.eq.s32.totalorder %s16, 0
      %p103 = por %p101, %p102
      %p104 = scmp.ne.s32.totalorder %s90, %s91
      %p105 = scmp.eq.s32.totalorder %s17, 1
      %p106 = por %p104, %p105
      %p108 = scmp.ne.s32.totalorder %s91, %s107
      %p109 = scmp.eq.s32.totalorder %s17, 0
      %p110 = por %p108, %p109
      %p111 = scmp.le.s32.totalorder 1, %s11
      %p112 = scmp.lt.s32.totalorder %s11, 3
      %p113 = pnand %p111, %p112
      %p114 = pneg %p113
      // Predicated region
      $region9: #{tpu_custom_call.1} parent=5 // pred_check
        _
      $region10: #{tpu_custom_call.1} parent=5 // pred_check_branch
        %116 = sbr.rel (%p113) target = $region12
      $region11: #{tpu_custom_call.1} parent=5 // pred_region
        %s117 = ssub.s32 %s11, 1
        // Predicated region
        $region13: #{tpu_custom_call.1} parent=11 // pred_check
          %p118 = pneg %p75
        $region14: #{tpu_custom_call.1} parent=11 // pred_check_branch
          %120 = sbr.rel (%p118) target = $region16
        $region15: #{tpu_custom_call.1} parent=11 // pred_region
          %p121 = scmp.lt.s32.totalorder %s21, 0
          %s122 = scalar_select %p121, %s21, 0
          %s123 = smul.addr %s122, 2
          %s124 = scalar_lea.vmem %s1, %s123
        $region16: #{tpu_custom_call.1} parent=11 // pred_fallthru
          _
      $region12: #{tpu_custom_call.1} parent=5 // pred_fallthru
        _
      %p125 = scmp.lt.s32.totalorder %s11, 2
      // Predicated region
      $region17: #{tpu_custom_call.1} parent=5 // pred_check
        %p126 = pneg %p125
      $region18: #{tpu_custom_call.1} parent=5 // pred_check_branch
        %128 = sbr.rel (%p126) target = $region20
      $region19: #{tpu_custom_call.1} parent=5 // pred_region
        // Predicated region
        $region21: #{tpu_custom_call.1} parent=19 // pred_check
          %p129 = pneg %p43
        $region22: #{tpu_custom_call.1} parent=19 // pred_check_branch
          %131 = sbr.rel (%p129) target = $region24
        $region23: #{tpu_custom_call.1} parent=19 // pred_region
          %p132 = scmp.lt.s32.totalorder %s18, 1
          %s133 = scalar_select %p132, %s18, 1
          %s134 = smul.addr %s133, 2
          %s135 = smul.addr %s134, 4
          %s136 = scalar_lea.vmem %s0, %s135
        $region24: #{tpu_custom_call.1} parent=19 // pred_fallthru
          _
      $region20: #{tpu_custom_call.1} parent=5 // pred_fallthru
        _
      %p137 = scmp.le.s32.totalorder 1, %s11
      %p138 = scmp.lt.s32.totalorder %s11, 3
      %p139 = pnand %p137, %p138
      %p140 = pneg %p139
      // Predicated region
      $region25: #{tpu_custom_call.1} parent=5 // pred_check
        _
      $region26: #{tpu_custom_call.1} parent=5 // pred_check_branch
        %142 = sbr.rel (%p139) target = $region28
      $region27: #{tpu_custom_call.1} parent=5 // pred_region
        %s143 = ssub.s32 %s11, 1
        %p144 = scmp.lt.s32.totalorder %s20, 1
        %s145 = scalar_select %p144, %s20, 1
        %s146 = smul.addr %s145, 2
        %s147 = smul.addr %s146, 4
        %s148 = scalar_lea.vmem %s0, %s147
        %p149 = pneg %p49
        %p150 = pneg %p46
        %p151 = scmp.lt.s32.totalorder %s21, 0
        %s152 = scalar_select %p151, %s21, 0
        %s153 = smul.addr %s152, 2
        %s154 = scalar_lea.vmem %s1, %s153
        %p155 = pneg %p75
        %p156 = pneg %p72
        %p157 = pneg %p103
        %p158 = pneg %p100
        %s159 = sand.u32 %s90, 1
        %s160 = scalar_lea.sflag [#allocation4], %s159
        %s161 = sand.u32 %s90, 1
        %s162 = smul.addr %s161, 8
        %s163 = scalar_lea.vmem [#allocation3], %s162
        %p164 = scmp.lt.s32.totalorder %s20, 1
        %s165 = scalar_select %p164, %s20, 1
        %s166 = smul.addr %s165, 2
        %s167 = smul.addr %s166, 4
        %s168 = scalar_lea.vmem %s0, %s167
        %p169 = scmp.lt.s32.totalorder %s21, 0
        %s170 = scalar_select %p169, %s21, 0
        %s171 = smul.addr %s170, 2
        %s172 = scalar_lea.vmem %s1, %s171
        %p174 = scmp.eq.s32.totalorder %s21, 0
        // Predicated region
        $region29: #{tpu_custom_call.1} parent=27 // pred_check
          %p175 = pneg %p174
        $region30: #{tpu_custom_call.1} parent=27 // pred_check_branch
          %177 = sbr.rel (%p175) target = $region32
        $region31: #{tpu_custom_call.1} parent=27 // pred_region
          %v178 = vld [vmem:[%s168] sm:$0xff]
          %180 = vst [vmem:[#allocation1] ss:$2 sm:$0xff] %v178
          %v181 = vld.sshfl [vmem:[#allocation1] sm:$0xff pattern:$0x75316420]
          %v182 = vld.sshfl [vmem:[#allocation1 + $0x8] sm:$0xff pattern:$0x75316420]
          %v185 = vpack.c.bf16 %v182, %v181
          %v187 = vunpack.c.l.b16 %v185
          %v188 = vpack.c.b16 %v187, %v187
          %189 = vrot.lane.b32.xlu0 %v188, 111
          %v190 = vpop.permute.xlu0 %189
          %191 = vrot.lane.b32.xlu0 %v188, 113
          %v192 = vpop.permute.xlu0 %191
          %193 = vrot.lane.b32.xlu0 %v188, 115
          %v194 = vpop.permute.xlu0 %193
          %vm195 = vcmask 7168
          %v198 = vsel %vm195, %v190, %v192
          %vm199 = vcmask 138240
          %v201 = vsel %vm199, %v198, %v194
          %vm203 = vcmask 140288
          %204 = vst.msk [vmem:[#allocation2] sm:$0x3] %vm203, %v201
          %205 = vrot.lane.b32.xlu0 %v188, 127
          %v206 = vpop.permute.xlu0 %205
          %207 = vrot.lane.b32.xlu0 %v188, 1
          %v208 = vpop.permute.xlu0 %207
          %209 = vrot.lane.b32.xlu0 %v188, 3
          %v210 = vpop.permute.xlu0 %209
          %v213 = vsel %vm195, %v206, %v208
          %v215 = vsel %vm199, %v213, %v210
          %217 = vrot.lane.b32.xlu0 %v215, 18
          %v218 = vpop.permute.xlu0 %217
          %vm220 = vcmask 287888
          %221 = vst.msk [vmem:[#allocation2] sm:$0x3] %vm220, %v218
          %223 = vrot.lane.b32.xlu0 %v201, 36
          %v224 = vpop.permute.xlu0 %223
          %vm226 = vcmask 435488
          %227 = vst.msk [vmem:[#allocation2] sm:$0x3] %vm226, %v224
          %228 = vrot.lane.b32.xlu0 %v188, 95
          %v229 = vpop.permute.xlu0 %228
          %230 = vrot.lane.b32.xlu0 %v188, 97
          %v231 = vpop.permute.xlu0 %230
          %232 = vrot.lane.b32.xlu0 %v188, 99
          %v233 = vpop.permute.xlu0 %232
          %v236 = vsel %vm195, %v229, %v231
          %v238 = vsel %vm199, %v236, %v233
          %240 = vrot.lane.b32.xlu0 %v238, 54
          %v241 = vpop.permute.xlu0 %240
          %vm243 = vcmask 583088
          %244 = vst.msk [vmem:[#allocation2] sm:$0x3] %vm243, %v241
          %245 = vrot.lane.b32.xlu0 %v188, 79
          %v246 = vpop.permute.xlu0 %245
          %247 = vrot.lane.b32.xlu0 %v188, 81
          %v248 = vpop.permute.xlu0 %247
          %249 = vrot.lane.b32.xlu0 %v188, 83
          %v250 = vpop.permute.xlu0 %249
          %v253 = vsel %vm195, %v246, %v248
          %v255 = vsel %vm199, %v253, %v250
          %257 = vrot.lane.b32.xlu0 %v255, 72
          %v258 = vpop.permute.xlu0 %257
          %vm260 = vcmask 730688
          %261 = vst.msk [vmem:[#allocation2] sm:$0x3] %vm260, %v258
          %262 = vrot.lane.b32.xlu0 %v188, 63
          %v263 = vpop.permute.xlu0 %262
          %264 = vrot.lane.b32.xlu0 %v188, 65
          %v265 = vpop.permute.xlu0 %264
          %266 = vrot.lane.b32.xlu0 %v188, 67
          %v267 = vpop.permute.xlu0 %266
          %v270 = vsel %vm195, %v263, %v265
          %v272 = vsel %vm199, %v270, %v267
          %274 = vrot.lane.b32.xlu0 %v272, 90
          %v275 = vpop.permute.xlu0 %274
          %vm277 = vcmask 878288
          %278 = vst.msk [vmem:[#allocation2] sm:$0x3] %vm277, %v275
          %279 = vrot.lane.b32.xlu0 %v188, 47
          %v280 = vpop.permute.xlu0 %279
          %281 = vrot.lane.b32.xlu0 %v188, 49
          %v282 = vpop.permute.xlu0 %281
          %283 = vrot.lane.b32.xlu0 %v188, 51
          %v284 = vpop.permute.xlu0 %283
          %v287 = vsel %vm195, %v280, %v282
          %v289 = vsel %vm199, %v287, %v284
          %291 = vrot.lane.b32.xlu0 %v289, 108
          %v292 = vpop.permute.xlu0 %291
          %vm294 = vcmask 1025888
          %295 = vst.msk [vmem:[#allocation2] sm:$0x3] %vm294, %v292
          %296 = vrot.lane.b32.xlu0 %v188, 31
          %v297 = vpop.permute.xlu0 %296
          %298 = vrot.lane.b32.xlu0 %v188, 33
          %v299 = vpop.permute.xlu0 %298
          %300 = vrot.lane.b32.xlu0 %v188, 35
          %v301 = vpop.permute.xlu0 %300
          %v304 = vsel %vm195, %v297, %v299
          %v306 = vsel %vm199, %v304, %v301
          %308 = vrot.lane.b32.xlu0 %v306, 126
          %v309 = vpop.permute.xlu0 %308
          %v310 = vrot.slane %v309, 6
          %vm311 = vcmask 1031168
          %v312 = vsel %vm311, %v310, %v309
          %vm314 = vcmask 1042416
          %vm315 = vcmask 125954
          %vm316 = vmor %vm315, %vm314
          %317 = vst.msk [vmem:[#allocation2] sm:$0xf] %vm316, %v312
          %318 = vrot.lane.b32.xlu0 %v188, 15
          %v319 = vpop.permute.xlu0 %318
          %320 = vrot.lane.b32.xlu0 %v188, 17
          %v321 = vpop.permute.xlu0 %320
          %322 = vrot.lane.b32.xlu0 %v188, 19
          %v323 = vpop.permute.xlu0 %322
          %v326 = vsel %vm195, %v319, %v321
          %v328 = vsel %vm199, %v326, %v323
          %330 = vrot.lane.b32.xlu0 %v328, 16
          %v331 = vpop.permute.xlu0 %330
          %vm333 = vcmask 271488
          %334 = vst.msk [vmem:[#allocation2 + $0x2] sm:$0x3] %vm333, %v331
          %v335 = vunpack.c.h.b16 %v185
          %v336 = vpack.c.b16 %v335, %v335
          %337 = vrot.lane.b32.xlu0 %v336, 127
          %v338 = vpop.permute.xlu0 %337
          %339 = vrot.lane.b32.xlu0 %v336, 1
          %v340 = vpop.permute.xlu0 %339
          %341 = vrot.lane.b32.xlu0 %v336, 3
          %v342 = vpop.permute.xlu0 %341
          %v345 = vsel %vm195, %v338, %v340
          %v347 = vsel %vm199, %v345, %v342
          %349 = vrot.lane.b32.xlu0 %v347, 34
          %v350 = vpop.permute.xlu0 %349
          %vm352 = vcmask 419088
          %353 = vst.msk [vmem:[#allocation2 + $0x2] sm:$0x3] %vm352, %v350
          %354 = vrot.lane.b32.xlu0 %v336, 111
          %v355 = vpop.permute.xlu0 %354
          %356 = vrot.lane.b32.xlu0 %v336, 113
          %v357 = vpop.permute.xlu0 %356
          %358 = vrot.lane.b32.xlu0 %v336, 115
          %v359 = vpop.permute.xlu0 %358
          %v362 = vsel %vm195, %v355, %v357
          %v364 = vsel %vm199, %v362, %v359
          %366 = vrot.lane.b32.xlu0 %v364, 52
          %v367 = vpop.permute.xlu0 %366
          %vm369 = vcmask 566688
          %370 = vst.msk [vmem:[#allocation2 + $0x2] sm:$0x3] %vm369, %v367
          %371 = vrot.lane.b32.xlu0 %v336, 95
          %v372 = vpop.permute.xlu0 %371
          %373 = vrot.lane.b32.xlu0 %v336, 97
          %v374 = vpop.permute.xlu0 %373
          %375 = vrot.lane.b32.xlu0 %v336, 99
          %v376 = vpop.permute.xlu0 %375
          %v379 = vsel %vm195, %v372, %v374
          %v381 = vsel %vm199, %v379, %v376
          %383 = vrot.lane.b32.xlu0 %v381, 70
          %v384 = vpop.permute.xlu0 %383
          %vm386 = vcmask 714288
          %387 = vst.msk [vmem:[#allocation2 + $0x2] sm:$0x3] %vm386, %v384
          %388 = vrot.lane.b32.xlu0 %v336, 79
          %v389 = vpop.permute.xlu0 %388
          %390 = vrot.lane.b32.xlu0 %v336, 81
          %v391 = vpop.permute.xlu0 %390
          %392 = vrot.lane.b32.xlu0 %v336, 83
          %v393 = vpop.permute.xlu0 %392
          %v396 = vsel %vm195, %v389, %v391
          %v398 = vsel %vm199, %v396, %v393
          %400 = vrot.lane.b32.xlu0 %v398, 88
          %v401 = vpop.permute.xlu0 %400
          %vm403 = vcmask 861888
          %404 = vst.msk [vmem:[#allocation2 + $0x2] sm:$0x3] %vm403, %v401
          %405 = vrot.lane.b32.xlu0 %v336, 63
          %v406 = vpop.permute.xlu0 %405
          %407 = vrot.lane.b32.xlu0 %v336, 65
          %v408 = vpop.permute.xlu0 %407
          %409 = vrot.lane.b32.xlu0 %v336, 67
          %v410 = vpop.permute.xlu0 %409
          %v413 = vsel %vm195, %v406, %v408
          %v415 = vsel %vm199, %v413, %v410
          %417 = vrot.lane.b32.xlu0 %v415, 106
          %v418 = vpop.permute.xlu0 %417
          %vm420 = vcmask 1009488
          %421 = vst.msk [vmem:[#allocation2 + $0x2] sm:$0x3] %vm420, %v418
          %422 = vrot.lane.b32.xlu0 %v336, 47
          %v423 = vpop.permute.xlu0 %422
          %424 = vrot.lane.b32.xlu0 %v336, 49
          %v425 = vpop.permute.xlu0 %424
          %426 = vrot.lane.b32.xlu0 %v336, 51
          %v427 = vpop.permute.xlu0 %426
          %v430 = vsel %vm195, %v423, %v425
          %v432 = vsel %vm199, %v430, %v427
          %434 = vrot.lane.b32.xlu0 %v432, 124
          %v435 = vpop.permute.xlu0 %434
          %v436 = vrot.slane %v435, 6
          %vm437 = vcmask 1014784
          %v438 = vsel %vm437, %v436, %v435
          %vm440 = vcmask 1042400
          %vm441 = vcmask 109570
          %vm442 = vmor %vm441, %vm440
          %443 = vst.msk [vmem:[#allocation2 + $0x2] sm:$0xf] %vm442, %v438
          %444 = vrot.lane.b32.xlu0 %v336, 31
          %v445 = vpop.permute.xlu0 %444
          %446 = vrot.lane.b32.xlu0 %v336, 33
          %v447 = vpop.permute.xlu0 %446
          %448 = vrot.lane.b32.xlu0 %v336, 35
          %v449 = vpop.permute.xlu0 %448
          %v452 = vsel %vm195, %v445, %v447
          %v454 = vsel %vm199, %v452, %v449
          %456 = vrot.lane.b32.xlu0 %v454, 14
          %v457 = vpop.permute.xlu0 %456
          %vm459 = vcmask 255088
          %460 = vst.msk [vmem:[#allocation2 + $0x4] sm:$0x3] %vm459, %v457
          %461 = vrot.lane.b32.xlu0 %v336, 15
          %v462 = vpop.permute.xlu0 %461
          %463 = vrot.lane.b32.xlu0 %v336, 17
          %v464 = vpop.permute.xlu0 %463
          %465 = vrot.lane.b32.xlu0 %v336, 19
          %v466 = vpop.permute.xlu0 %465
          %v469 = vsel %vm195, %v462, %v464
          %v471 = vsel %vm199, %v469, %v466
          %473 = vrot.lane.b32.xlu0 %v471, 32
          %v474 = vpop.permute.xlu0 %473
          %vm476 = vcmask 402688
          %477 = vst.msk [vmem:[#allocation2 + $0x4] sm:$0x3] %vm476, %v474
          %478 = vrot.lane.b32.xlu0 %v454, 50
          %v479 = vpop.permute.xlu0 %478
          %vm481 = vcmask 550288
          %482 = vst.msk [vmem:[#allocation2 + $0x4] sm:$0x3] %vm481, %v479
          %vm483 = vcmask 566816
          %484 = vst.msk [vmem:[#allocation2 + $0x4] sm:$0x3] %vm483, 0
        $region32: #{tpu_custom_call.1} parent=27 // pred_fallthru
          _
        %v485 = vld [vmem:[%s172] sm:$0x3]
        %v486 = vld [vmem:[#allocation2] sm:$0x3f]
        %s487 = scalar_lea.vmem %s172, 2
        %v488 = vld [vmem:[%s487] sm:$0x3]
        %490 = vst [vmem:[#allocation1] ss:$4 sm:$0xff] %v486
        %v491 = vld.sshfl [vmem:[#allocation1] sm:$0xff pattern:$0x73625140]
        %v493 = vld.sshfl [vmem:[#allocation1 + $0x8] sm:$0xff pattern:$0x73625140]
        %v495 = vld.sshfl [vmem:[#allocation1 + $0x10] sm:$0xff pattern:$0x73625140]
        %497 = vrot.lane.b32.xlu0 %v491, 127
        %v498 = vpop.permute.xlu0 %497
        %499 = vrot.lane.b32.xlu0 %v493, 127
        %v500 = vpop.permute.xlu0 %499
        %501 = vrot.lane.b32.xlu0 %v495, 127
        %v502 = vpop.permute.xlu0 %501
        %vm503 = vcmask 1039360
        %v504 = vsel %vm503, %v498, %v500
        %v505 = vsel %vm503, %v500, %v502
        %vm506 = vcmask 31744
        %v508 = vsel %vm506, %v488, 0
        %vm510 = vcmask 1041408
        %v512 = vsel %vm510, %v504, 0
        %v515 = vsel %vm510, %v505, 0
        %v518 = vsel %vm510, %v502, 0
        %520 = vmatpush.bf16.msra.mxu0 0
        %521 = vmatpush.bf16.msra.mxu0 0
        %522 = vmatpush.bf16.msra.mxu0 0
        %523 = vmatpush.bf16.msra.mxu0 0
        %524 = vmatpush.bf16.msra.mxu0 0
        %525 = vmatpush.bf16.msra.mxu0 0
        %526 = vmatpush.bf16.msra.mxu0 0
        %527 = vmatpush.bf16.msra.mxu0 %v512
        %528 = vmatmul.bf16.gmra.mxu0 %v508
        %v529 = vpop.f32.mrf.mxu0
        %v530 = vadd.f32 0.0, %v529
        %v531 = vpop.f32.mrf.mxu0
        %532 = vdwg.mxu0
        %533 = vmatpush.bf16.msra.mxu0 0
        %534 = vmatpush.bf16.msra.mxu0 0
        %535 = vmatpush.bf16.msra.mxu0 0
        %536 = vmatpush.bf16.msra.mxu0 0
        %537 = vmatpush.bf16.msra.mxu0 0
        %538 = vmatpush.bf16.msra.mxu0 0
        %539 = vmatpush.bf16.msra.mxu0 0
        %540 = vmatpush.bf16.msra.mxu0 %v515
        %541 = vmatmul.bf16.gmra.mxu0 %v508
        %v542 = vpop.f32.mrf.mxu0
        %v543 = vadd.f32 0.0, %v542
        %v544 = vpop.f32.mrf.mxu0
        %545 = vdwg.mxu0
        %546 = vmatpush.bf16.msra.mxu0 0
        %547 = vmatpush.bf16.msra.mxu0 0
        %548 = vmatpush.bf16.msra.mxu0 0
        %549 = vmatpush.bf16.msra.mxu0 0
        %550 = vmatpush.bf16.msra.mxu0 0
        %551 = vmatpush.bf16.msra.mxu0 0
        %552 = vmatpush.bf16.msra.mxu0 0
        %553 = vmatpush.bf16.msra.mxu0 %v518
        %554 = vmatmul.bf16.gmra.mxu0 %v508
        %v555 = vpop.f32.mrf.mxu0
        %v556 = vadd.f32 0.0, %v555
        %v557 = vpop.f32.mrf.mxu0
        %558 = vdwg.mxu0
        %559 = vst [vmem:[#allocation1] ss:$4 sm:$0xff] %v486
        %v560 = vld.sshfl [vmem:[#allocation1] sm:$0xff pattern:$0x73625140]
        %v561 = vld.sshfl [vmem:[#allocation1 + $0x8] sm:$0xff pattern:$0x73625140]
        %v562 = vld.sshfl [vmem:[#allocation1 + $0x10] sm:$0xff pattern:$0x73625140]
        %v564 = vsel %vm506, %v485, 0
        %v566 = vsel %vm510, %v560, 0
        %v568 = vsel %vm510, %v561, 0
        %v570 = vsel %vm510, %v562, 0
        %572 = vmatpush.bf16.msra.mxu0 0
        %573 = vmatpush.bf16.msra.mxu0 0
        %574 = vmatpush.bf16.msra.mxu0 0
        %575 = vmatpush.bf16.msra.mxu0 0
        %576 = vmatpush.bf16.msra.mxu0 0
        %577 = vmatpush.bf16.msra.mxu0 0
        %578 = vmatpush.bf16.msra.mxu0 0
        %579 = vmatpush.bf16.msra.mxu0 %v566
        %580 = vmatmul.bf16.gmra.mxu0 %v564
        %v581 = vpop.f32.mrf.mxu0
        %v582 = vadd.f32 %v530, %v581
        %v583 = vpop.f32.mrf.mxu0
        %584 = vdwg.mxu0
        %585 = vmatpush.bf16.msra.mxu0 0
        %586 = vmatpush.bf16.msra.mxu0 0
        %587 = vmatpush.bf16.msra.mxu0 0
        %588 = vmatpush.bf16.msra.mxu0 0
        %589 = vmatpush.bf16.msra.mxu0 0
        %590 = vmatpush.bf16.msra.mxu0 0
        %591 = vmatpush.bf16.msra.mxu0 0
        %592 = vmatpush.bf16.msra.mxu0 %v568
        %593 = vmatmul.bf16.gmra.mxu0 %v564
        %v594 = vpop.f32.mrf.mxu0
        %v595 = vadd.f32 %v543, %v594
        %v596 = vpop.f32.mrf.mxu0
        %597 = vdwg.mxu0
        %598 = vmatpush.bf16.msra.mxu0 0
        %599 = vmatpush.bf16.msra.mxu0 0
        %600 = vmatpush.bf16.msra.mxu0 0
        %601 = vmatpush.bf16.msra.mxu0 0
        %602 = vmatpush.bf16.msra.mxu0 0
        %603 = vmatpush.bf16.msra.mxu0 0
        %604 = vmatpush.bf16.msra.mxu0 0
        %605 = vmatpush.bf16.msra.mxu0 %v570
        %606 = vmatmul.bf16.gmra.mxu0 %v564
        %v607 = vpop.f32.mrf.mxu0
        %v608 = vadd.f32 %v556, %v607
        %v609 = vpop.f32.mrf.mxu0
        %610 = vdwg.mxu0
        %s611 = scalar_lea.vmem %s172, 4
        %v612 = vld [vmem:[%s611] sm:$0x3]
        %v613 = vld [vmem:[#allocation2] sm:$0x3f]
        %615 = vst [vmem:[#allocation1] ss:$4 sm:$0xff] %v613
        %v616 = vld.sshfl [vmem:[#allocation1] sm:$0xff pattern:$0x73625140]
        %v618 = vld.sshfl [vmem:[#allocation1 + $0x8] sm:$0xff pattern:$0x73625140]
        %v620 = vld.sshfl [vmem:[#allocation1 + $0x10] sm:$0xff pattern:$0x73625140]
        %622 = vrot.lane.b32.xlu0 %v616, 126
        %v623 = vpop.permute.xlu0 %622
        %624 = vrot.lane.b32.xlu0 %v618, 126
        %v625 = vpop.permute.xlu0 %624
        %626 = vrot.lane.b32.xlu0 %v620, 126
        %v627 = vpop.permute.xlu0 %626
        %vm628 = vcmask 1031168
        %v629 = vsel %vm628, %v623, %v625
        %v630 = vsel %vm628, %v625, %v627
        %v632 = vsel %vm506, %v612, 0
        %v635 = vsel %vm510, %v629, 0
        %v638 = vsel %vm510, %v630, 0
        %v641 = vsel %vm510, %v627, 0
        %643 = vmatpush.bf16.msra.mxu0 0
        %644 = vmatpush.bf16.msra.mxu0 0
        %645 = vmatpush.bf16.msra.mxu0 0
        %646 = vmatpush.bf16.msra.mxu0 0
        %647 = vmatpush.bf16.msra.mxu0 0
        %648 = vmatpush.bf16.msra.mxu0 0
        %649 = vmatpush.bf16.msra.mxu0 0
        %650 = vmatpush.bf16.msra.mxu0 %v635
        %651 = vmatmul.bf16.gmra.mxu0 %v632
        %v652 = vpop.f32.mrf.mxu0
        %v653 = vadd.f32 0.0, %v652
        %v654 = vpop.f32.mrf.mxu0
        %655 = vdwg.mxu0
        %656 = vmatpush.bf16.msra.mxu0 0
        %657 = vmatpush.bf16.msra.mxu0 0
        %658 = vmatpush.bf16.msra.mxu0 0
        %659 = vmatpush.bf16.msra.mxu0 0
        %660 = vmatpush.bf16.msra.mxu0 0
        %661 = vmatpush.bf16.msra.mxu0 0
        %662 = vmatpush.bf16.msra.mxu0 0
        %663 = vmatpush.bf16.msra.mxu0 %v638
        %664 = vmatmul.bf16.gmra.mxu0 %v632
        %v665 = vpop.f32.mrf.mxu0
        %v666 = vadd.f32 0.0, %v665
        %v667 = vpop.f32.mrf.mxu0
        %668 = vdwg.mxu0
        %669 = vmatpush.bf16.msra.mxu0 0
        %670 = vmatpush.bf16.msra.mxu0 0
        %671 = vmatpush.bf16.msra.mxu0 0
        %672 = vmatpush.bf16.msra.mxu0 0
        %673 = vmatpush.bf16.msra.mxu0 0
        %674 = vmatpush.bf16.msra.mxu0 0
        %675 = vmatpush.bf16.msra.mxu0 0
        %676 = vmatpush.bf16.msra.mxu0 %v641
        %677 = vmatmul.bf16.gmra.mxu0 %v632
        %v678 = vpop.f32.mrf.mxu0
        %v679 = vadd.f32 0.0, %v678
        %v680 = vpop.f32.mrf.mxu0
        %681 = vdwg.mxu0
        %v682 = vadd.f32 %v582, %v653
        %v683 = vadd.f32 %v595, %v666
        %v684 = vadd.f32 %v608, %v679
        %s685 = scalar_lea.vmem %s172, 6
        %v686 = vld [vmem:[%s685] sm:$0x3]
        %v687 = vld [vmem:[#allocation2] sm:$0x3f]
        %689 = vst [vmem:[#allocation1] ss:$4 sm:$0xff] %v687
        %v690 = vld.sshfl [vmem:[#allocation1] sm:$0xff pattern:$0x73625140]
        %v692 = vld.sshfl [vmem:[#allocation1 + $0x8] sm:$0xff pattern:$0x73625140]
        %v694 = vld.sshfl [vmem:[#allocation1 + $0x10] sm:$0xff pattern:$0x73625140]
        %696 = vrot.lane.b32.xlu0 %v690, 110
        %v697 = vpop.permute.xlu0 %696
        %698 = vrot.lane.b32.xlu0 %v692, 110
        %v699 = vpop.permute.xlu0 %698
        %700 = vrot.lane.b32.xlu0 %v694, 110
        %v701 = vpop.permute.xlu0 %700
        %vm702 = vcmask 900096
        %v703 = vsel %vm702, %v697, %v699
        %v704 = vsel %vm702, %v699, %v701
        %v706 = vsel %vm506, %v686, 0
        %v709 = vsel %vm510, %v703, 0
        %v712 = vsel %vm510, %v704, 0
        %v715 = vsel %vm510, %v701, 0
        %717 = vmatpush.bf16.msra.mxu0 0
        %718 = vmatpush.bf16.msra.mxu0 0
        %719 = vmatpush.bf16.msra.mxu0 0
        %720 = vmatpush.bf16.msra.mxu0 0
        %721 = vmatpush.bf16.msra.mxu0 0
        %722 = vmatpush.bf16.msra.mxu0 0
        %723 = vmatpush.bf16.msra.mxu0 0
        %724 = vmatpush.bf16.msra.mxu0 %v709
        %725 = vmatmul.bf16.gmra.mxu0 %v706
        %v726 = vpop.f32.mrf.mxu0
        %v727 = vadd.f32 0.0, %v726
        %v728 = vpop.f32.mrf.mxu0
        %729 = vdwg.mxu0
        %730 = vmatpush.bf16.msra.mxu0 0
        %731 = vmatpush.bf16.msra.mxu0 0
        %732 = vmatpush.bf16.msra.mxu0 0
        %733 = vmatpush.bf16.msra.mxu0 0
        %734 = vmatpush.bf16.msra.mxu0 0
        %735 = vmatpush.bf16.msra.mxu0 0
        %736 = vmatpush.bf16.msra.mxu0 0
        %737 = vmatpush.bf16.msra.mxu0 %v712
        %738 = vmatmul.bf16.gmra.mxu0 %v706
        %v739 = vpop.f32.mrf.mxu0
        %v740 = vadd.f32 0.0, %v739
        %v741 = vpop.f32.mrf.mxu0
        %742 = vdwg.mxu0
        %743 = vmatpush.bf16.msra.mxu0 0
        %744 = vmatpush.bf16.msra.mxu0 0
        %745 = vmatpush.bf16.msra.mxu0 0
        %746 = vmatpush.bf16.msra.mxu0 0
        %747 = vmatpush.bf16.msra.mxu0 0
        %748 = vmatpush.bf16.msra.mxu0 0
        %749 = vmatpush.bf16.msra.mxu0 0
        %750 = vmatpush.bf16.msra.mxu0 %v715
        %751 = vmatmul.bf16.gmra.mxu0 %v706
        %v752 = vpop.f32.mrf.mxu0
        %v753 = vadd.f32 0.0, %v752
        %v754 = vpop.f32.mrf.mxu0
        %755 = vdwg.mxu0
        %v756 = vadd.f32 %v682, %v727
        %v757 = vadd.f32 %v683, %v740
        %v758 = vadd.f32 %v684, %v753
        %s759 = scalar_lea.vmem %s172, 8
        %v760 = vld [vmem:[%s759] sm:$0x3]
        %v761 = vld [vmem:[#allocation2] sm:$0x3f]
        %763 = vst [vmem:[#allocation1] ss:$4 sm:$0xff] %v761
        %v764 = vld.sshfl [vmem:[#allocation1] sm:$0xff pattern:$0x73625140]
        %v766 = vld.sshfl [vmem:[#allocation1 + $0x8] sm:$0xff pattern:$0x73625140]
        %v768 = vld.sshfl [vmem:[#allocation1 + $0x10] sm:$0xff pattern:$0x73625140]
        %770 = vrot.lane.b32.xlu0 %v764, 109
        %v771 = vpop.permute.xlu0 %770
        %772 = vrot.lane.b32.xlu0 %v766, 109
        %v773 = vpop.permute.xlu0 %772
        %774 = vrot.lane.b32.xlu0 %v768, 109
        %v775 = vpop.permute.xlu0 %774
        %vm776 = vcmask 891904
        %v777 = vsel %vm776, %v771, %v773
        %v778 = vsel %vm776, %v773, %v775
        %v780 = vsel %vm506, %v760, 0
        %v783 = vsel %vm510, %v777, 0
        %v786 = vsel %vm510, %v778, 0
        %v789 = vsel %vm510, %v775, 0
        %791 = vmatpush.bf16.msra.mxu0 0
        %792 = vmatpush.bf16.msra.mxu0 0
        %793 = vmatpush.bf16.msra.mxu0 0
        %794 = vmatpush.bf16.msra.mxu0 0
        %795 = vmatpush.bf16.msra.mxu0 0
        %796 = vmatpush.bf16.msra.mxu0 0
        %797 = vmatpush.bf16.msra.mxu0 0
        %798 = vmatpush.bf16.msra.mxu0 %v783
        %799 = vmatmul.bf16.gmra.mxu0 %v780
        %v800 = vpop.f32.mrf.mxu0
        %v801 = vadd.f32 0.0, %v800
        %v802 = vpop.f32.mrf.mxu0
        %803 = vdwg.mxu0
        %804 = vmatpush.bf16.msra.mxu0 0
        %805 = vmatpush.bf16.msra.mxu0 0
        %806 = vmatpush.bf16.msra.mxu0 0
        %807 = vmatpush.bf16.msra.mxu0 0
        %808 = vmatpush.bf16.msra.mxu0 0
        %809 = vmatpush.bf16.msra.mxu0 0
        %810 = vmatpush.bf16.msra.mxu0 0
        %811 = vmatpush.bf16.msra.mxu0 %v786
        %812 = vmatmul.bf16.gmra.mxu0 %v780
        %v813 = vpop.f32.mrf.mxu0
        %v814 = vadd.f32 0.0, %v813
        %v815 = vpop.f32.mrf.mxu0
        %816 = vdwg.mxu0
        %817 = vmatpush.bf16.msra.mxu0 0
        %818 = vmatpush.bf16.msra.mxu0 0
        %819 = vmatpush.bf16.msra.mxu0 0
        %820 = vmatpush.bf16.msra.mxu0 0
        %821 = vmatpush.bf16.msra.mxu0 0
        %822 = vmatpush.bf16.msra.mxu0 0
        %823 = vmatpush.bf16.msra.mxu0 0
        %824 = vmatpush.bf16.msra.mxu0 %v789
        %825 = vmatmul.bf16.gmra.mxu0 %v780
        %v826 = vpop.f32.mrf.mxu0
        %v827 = vadd.f32 0.0, %v826
        %v828 = vpop.f32.mrf.mxu0
        %829 = vdwg.mxu0
        %v830 = vadd.f32 %v756, %v801
        %v831 = vadd.f32 %v757, %v814
        %v832 = vadd.f32 %v758, %v827
        %s833 = scalar_lea.vmem %s172, 10
        %v834 = vld [vmem:[%s833] sm:$0x3]
        %v835 = vld [vmem:[#allocation2] sm:$0x3f]
        %837 = vst [vmem:[#allocation1] ss:$4 sm:$0xff] %v835
        %v838 = vld.sshfl [vmem:[#allocation1] sm:$0xff pattern:$0x73625140]
        %v840 = vld.sshfl [vmem:[#allocation1 + $0x8] sm:$0xff pattern:$0x73625140]
        %v842 = vld.sshfl [vmem:[#allocation1 + $0x10] sm:$0xff pattern:$0x73625140]
        %844 = vrot.lane.b32.xlu0 %v838, 108
        %v845 = vpop.permute.xlu0 %844
        %846 = vrot.lane.b32.xlu0 %v840, 108
        %v847 = vpop.permute.xlu0 %846
        %848 = vrot.lane.b32.xlu0 %v842, 108
        %v849 = vpop.permute.xlu0 %848
        %vm850 = vcmask 883712
        %v851 = vsel %vm850, %v845, %v847
        %v852 = vsel %vm850, %v847, %v849
        %v854 = vsel %vm506, %v834, 0
        %v857 = vsel %vm510, %v851, 0
        %v860 = vsel %vm510, %v852, 0
        %v863 = vsel %vm510, %v849, 0
        %865 = vmatpush.bf16.msra.mxu0 0
        %866 = vmatpush.bf16.msra.mxu0 0
        %867 = vmatpush.bf16.msra.mxu0 0
        %868 = vmatpush.bf16.msra.mxu0 0
        %869 = vmatpush.bf16.msra.mxu0 0
        %870 = vmatpush.bf16.msra.mxu0 0
        %871 = vmatpush.bf16.msra.mxu0 0
        %872 = vmatpush.bf16.msra.mxu0 %v857
        %873 = vmatmul.bf16.gmra.mxu0 %v854
        %v874 = vpop.f32.mrf.mxu0
        %v875 = vadd.f32 0.0, %v874
        %v876 = vpop.f32.mrf.mxu0
        %877 = vdwg.mxu0
        %878 = vmatpush.bf16.msra.mxu0 0
        %879 = vmatpush.bf16.msra.mxu0 0
        %880 = vmatpush.bf16.msra.mxu0 0
        %881 = vmatpush.bf16.msra.mxu0 0
        %882 = vmatpush.bf16.msra.mxu0 0
        %883 = vmatpush.bf16.msra.mxu0 0
        %884 = vmatpush.bf16.msra.mxu0 0
        %885 = vmatpush.bf16.msra.mxu0 %v860
        %886 = vmatmul.bf16.gmra.mxu0 %v854
        %v887 = vpop.f32.mrf.mxu0
        %v888 = vadd.f32 0.0, %v887
        %v889 = vpop.f32.mrf.mxu0
        %890 = vdwg.mxu0
        %891 = vmatpush.bf16.msra.mxu0 0
        %892 = vmatpush.bf16.msra.mxu0 0
        %893 = vmatpush.bf16.msra.mxu0 0
        %894 = vmatpush.bf16.msra.mxu0 0
        %895 = vmatpush.bf16.msra.mxu0 0
        %896 = vmatpush.bf16.msra.mxu0 0
        %897 = vmatpush.bf16.msra.mxu0 0
        %898 = vmatpush.bf16.msra.mxu0 %v863
        %899 = vmatmul.bf16.gmra.mxu0 %v854
        %v900 = vpop.f32.mrf.mxu0
        %v901 = vadd.f32 0.0, %v900
        %v902 = vpop.f32.mrf.mxu0
        %903 = vdwg.mxu0
        %v904 = vadd.f32 %v830, %v875
        %v905 = vadd.f32 %v831, %v888
        %v906 = vadd.f32 %v832, %v901
        %s907 = scalar_lea.vmem %s172, 12
        %v908 = vld [vmem:[%s907] sm:$0x3]
        %v909 = vld [vmem:[#allocation2] sm:$0x3f]
        %911 = vst [vmem:[#allocation1] ss:$4 sm:$0xff] %v909
        %v912 = vld.sshfl [vmem:[#allocation1] sm:$0xff pattern:$0x73625140]
        %v914 = vld.sshfl [vmem:[#allocation1 + $0x8] sm:$0xff pattern:$0x73625140]
        %v916 = vld.sshfl [vmem:[#allocation1 + $0x10] sm:$0xff pattern:$0x73625140]
        %918 = vrot.lane.b32.xlu0 %v912, 92
        %v919 = vpop.permute.xlu0 %918
        %920 = vrot.lane.b32.xlu0 %v914, 92
        %v921 = vpop.permute.xlu0 %920
        %922 = vrot.lane.b32.xlu0 %v916, 92
        %v923 = vpop.permute.xlu0 %922
        %vm924 = vcmask 752640
        %v925 = vsel %vm924, %v919, %v921
        %v926 = vsel %vm924, %v921, %v923
        %v928 = vsel %vm506, %v908, 0
        %v931 = vsel %vm510, %v925, 0
        %v934 = vsel %vm510, %v926, 0
        %v937 = vsel %vm510, %v923, 0
        %939 = vmatpush.bf16.msra.mxu0 0
        %940 = vmatpush.bf16.msra.mxu0 0
        %941 = vmatpush.bf16.msra.mxu0 0
        %942 = vmatpush.bf16.msra.mxu0 0
        %943 = vmatpush.bf16.msra.mxu0 0
        %944 = vmatpush.bf16.msra.mxu0 0
        %945 = vmatpush.bf16.msra.mxu0 0
        %946 = vmatpush.bf16.msra.mxu0 %v931
        %947 = vmatmul.bf16.gmra.mxu0 %v928
        %v948 = vpop.f32.mrf.mxu0
        %v949 = vadd.f32 0.0, %v948
        %v950 = vpop.f32.mrf.mxu0
        %951 = vdwg.mxu0
        %952 = vmatpush.bf16.msra.mxu0 0
        %953 = vmatpush.bf16.msra.mxu0 0
        %954 = vmatpush.bf16.msra.mxu0 0
        %955 = vmatpush.bf16.msra.mxu0 0
        %956 = vmatpush.bf16.msra.mxu0 0
        %957 = vmatpush.bf16.msra.mxu0 0
        %958 = vmatpush.bf16.msra.mxu0 0
        %959 = vmatpush.bf16.msra.mxu0 %v934
        %960 = vmatmul.bf16.gmra.mxu0 %v928
        %v961 = vpop.f32.mrf.mxu0
        %v962 = vadd.f32 0.0, %v961
        %v963 = vpop.f32.mrf.mxu0
        %964 = vdwg.mxu0
        %965 = vmatpush.bf16.msra.mxu0 0
        %966 = vmatpush.bf16.msra.mxu0 0
        %967 = vmatpush.bf16.msra.mxu0 0
        %968 = vmatpush.bf16.msra.mxu0 0
        %969 = vmatpush.bf16.msra.mxu0 0
        %970 = vmatpush.bf16.msra.mxu0 0
        %971 = vmatpush.bf16.msra.mxu0 0
        %972 = vmatpush.bf16.msra.mxu0 %v937
        %973 = vmatmul.bf16.gmra.mxu0 %v928
        %v974 = vpop.f32.mrf.mxu0
        %v975 = vadd.f32 0.0, %v974
        %v976 = vpop.f32.mrf.mxu0
        %977 = vdwg.mxu0
        %v978 = vadd.f32 %v904, %v949
        %v979 = vadd.f32 %v905, %v962
        %v980 = vadd.f32 %v906, %v975
        %s981 = scalar_lea.vmem %s172, 14
        %v982 = vld [vmem:[%s981] sm:$0x3]
        %v983 = vld [vmem:[#allocation2] sm:$0x3f]
        %985 = vst [vmem:[#allocation1] ss:$4 sm:$0xff] %v983
        %v986 = vld.sshfl [vmem:[#allocation1] sm:$0xff pattern:$0x73625140]
        %v988 = vld.sshfl [vmem:[#allocation1 + $0x8] sm:$0xff pattern:$0x73625140]
        %v990 = vld.sshfl [vmem:[#allocation1 + $0x10] sm:$0xff pattern:$0x73625140]
        %992 = vrot.lane.b32.xlu0 %v986, 91
        %v993 = vpop.permute.xlu0 %992
        %994 = vrot.lane.b32.xlu0 %v988, 91
        %v995 = vpop.permute.xlu0 %994
        %996 = vrot.lane.b32.xlu0 %v990, 91
        %v997 = vpop.permute.xlu0 %996
        %vm998 = vcmask 744448
        %v999 = vsel %vm998, %v993, %v995
        %v1000 = vsel %vm998, %v995, %v997
        %v1002 = vsel %vm506, %v982, 0
        %v1005 = vsel %vm510, %v999, 0
        %v1008 = vsel %vm510, %v1000, 0
        %v1011 = vsel %vm510, %v997, 0
        %1013 = vmatpush.bf16.msra.mxu0 0
        %1014 = vmatpush.bf16.msra.mxu0 0
        %1015 = vmatpush.bf16.msra.mxu0 0
        %1016 = vmatpush.bf16.msra.mxu0 0
        %1017 = vmatpush.bf16.msra.mxu0 0
        %1018 = vmatpush.bf16.msra.mxu0 0
        %1019 = vmatpush.bf16.msra.mxu0 0
        %1020 = vmatpush.bf16.msra.mxu0 %v1005
        %1021 = vmatmul.bf16.gmra.mxu0 %v1002
        %v1022 = vpop.f32.mrf.mxu0
        %v1023 = vadd.f32 0.0, %v1022
        %v1024 = vpop.f32.mrf.mxu0
        %1025 = vdwg.mxu0
        %1026 = vmatpush.bf16.msra.mxu0 0
        %1027 = vmatpush.bf16.msra.mxu0 0
        %1028 = vmatpush.bf16.msra.mxu0 0
        %1029 = vmatpush.bf16.msra.mxu0 0
        %1030 = vmatpush.bf16.msra.mxu0 0
        %1031 = vmatpush.bf16.msra.mxu0 0
        %1032 = vmatpush.bf16.msra.mxu0 0
        %1033 = vmatpush.bf16.msra.mxu0 %v1008
        %1034 = vmatmul.bf16.gmra.mxu0 %v1002
        %v1035 = vpop.f32.mrf.mxu0
        %v1036 = vadd.f32 0.0, %v1035
        %v1037 = vpop.f32.mrf.mxu0
        %1038 = vdwg.mxu0
        %1039 = vmatpush.bf16.msra.mxu0 0
        %1040 = vmatpush.bf16.msra.mxu0 0
        %1041 = vmatpush.bf16.msra.mxu0 0
        %1042 = vmatpush.bf16.msra.mxu0 0
        %1043 = vmatpush.bf16.msra.mxu0 0
        %1044 = vmatpush.bf16.msra.mxu0 0
        %1045 = vmatpush.bf16.msra.mxu0 0
        %1046 = vmatpush.bf16.msra.mxu0 %v1011
        %1047 = vmatmul.bf16.gmra.mxu0 %v1002
        %v1048 = vpop.f32.mrf.mxu0
        %v1049 = vadd.f32 0.0, %v1048
        %v1050 = vpop.f32.mrf.mxu0
        %1051 = vdwg.mxu0
        %v1052 = vadd.f32 %v978, %v1023
        %v1053 = vadd.f32 %v979, %v1036
        %v1054 = vadd.f32 %v980, %v1049
        %s1055 = scalar_lea.vmem %s172, 16
        %v1056 = vld [vmem:[%s1055] sm:$0x3]
        %v1057 = vld [vmem:[#allocation2] sm:$0x3f]
        %1059 = vst [vmem:[#allocation1] ss:$4 sm:$0xff] %v1057
        %v1060 = vld.sshfl [vmem:[#allocation1] sm:$0xff pattern:$0x73625140]
        %v1062 = vld.sshfl [vmem:[#allocation1 + $0x8] sm:$0xff pattern:$0x73625140]
        %v1064 = vld.sshfl [vmem:[#allocation1 + $0x10] sm:$0xff pattern:$0x73625140]
        %1066 = vrot.lane.b32.xlu0 %v1060, 90
        %v1067 = vpop.permute.xlu0 %1066
        %1068 = vrot.lane.b32.xlu0 %v1062, 90
        %v1069 = vpop.permute.xlu0 %1068
        %1070 = vrot.lane.b32.xlu0 %v1064, 90
        %v1071 = vpop.permute.xlu0 %1070
        %vm1072 = vcmask 736256
        %v1073 = vsel %vm1072, %v1067, %v1069
        %v1074 = vsel %vm1072, %v1069, %v1071
        %v1076 = vsel %vm506, %v1056, 0
        %v1079 = vsel %vm510, %v1073, 0
        %v1082 = vsel %vm510, %v1074, 0
        %v1085 = vsel %vm510, %v1071, 0
        %1087 = vmatpush.bf16.msra.mxu0 0
        %1088 = vmatpush.bf16.msra.mxu0 0
        %1089 = vmatpush.bf16.msra.mxu0 0
        %1090 = vmatpush.bf16.msra.mxu0 0
        %1091 = vmatpush.bf16.msra.mxu0 0
        %1092 = vmatpush.bf16.msra.mxu0 0
        %1093 = vmatpush.bf16.msra.mxu0 0
        %1094 = vmatpush.bf16.msra.mxu0 %v1079
        %1095 = vmatmul.bf16.gmra.mxu0 %v1076
        %v1096 = vpop.f32.mrf.mxu0
        %v1097 = vadd.f32 0.0, %v1096
        %v1098 = vpop.f32.mrf.mxu0
        %1099 = vdwg.mxu0
        %1100 = vmatpush.bf16.msra.mxu0 0
        %1101 = vmatpush.bf16.msra.mxu0 0
        %1102 = vmatpush.bf16.msra.mxu0 0
        %1103 = vmatpush.bf16.msra.mxu0 0
        %1104 = vmatpush.bf16.msra.mxu0 0
        %1105 = vmatpush.bf16.msra.mxu0 0
        %1106 = vmatpush.bf16.msra.mxu0 0
        %1107 = vmatpush.bf16.msra.mxu0 %v1082
        %1108 = vmatmul.bf16.gmra.mxu0 %v1076
        %v1109 = vpop.f32.mrf.mxu0
        %v1110 = vadd.f32 0.0, %v1109
        %v1111 = vpop.f32.mrf.mxu0
        %1112 = vdwg.mxu0
        %1113 = vmatpush.bf16.msra.mxu0 0
        %1114 = vmatpush.bf16.msra.mxu0 0
        %1115 = vmatpush.bf16.msra.mxu0 0
        %1116 = vmatpush.bf16.msra.mxu0 0
        %1117 = vmatpush.bf16.msra.mxu0 0
        %1118 = vmatpush.bf16.msra.mxu0 0
        %1119 = vmatpush.bf16.msra.mxu0 0
        %1120 = vmatpush.bf16.msra.mxu0 %v1085
        %1121 = vmatmul.bf16.gmra.mxu0 %v1076
        %v1122 = vpop.f32.mrf.mxu0
        %v1123 = vadd.f32 0.0, %v1122
        %v1124 = vpop.f32.mrf.mxu0
        %1125 = vdwg.mxu0
        %v1126 = vadd.f32 %v1052, %v1097
        %v1127 = vadd.f32 %v1053, %v1110
        %v1128 = vadd.f32 %v1054, %v1123
        %1130 = vrot.lane.b32.xlu0 %v1126, 110
        %v1131 = vpop.permute.xlu0 %1130
        %1133 = vrot.lane.b32.xlu0 %v1126, 92
        %v1134 = vpop.permute.xlu0 %1133
        %1136 = vrot.lane.b32.xlu0 %v1126, 74
        %v1137 = vpop.permute.xlu0 %1136
        %1139 = vrot.lane.b32.xlu0 %v1126, 56
        %v1140 = vpop.permute.xlu0 %1139
        %1142 = vrot.lane.b32.xlu0 %v1126, 38
        %v1143 = vpop.permute.xlu0 %1142
        %1145 = vrot.lane.b32.xlu0 %v1126, 20
        %v1146 = vpop.permute.xlu0 %1145
        %1149 = vrot.lane.b32.xlu0 %v1126, 2
        %v1150 = vpop.permute.xlu0 %1149
        %1151 = vrot.lane.b32.xlu0 %v1127, 2
        %v1152 = vpop.permute.xlu0 %1151
        %vm1153 = vcmask 15360
        %v1154 = vsel %vm1153, %v1150, %v1152
        %1156 = vrot.lane.b32.xlu0 %v1127, 112
        %v1157 = vpop.permute.xlu0 %1156
        %1159 = vrot.lane.b32.xlu0 %v1127, 94
        %v1160 = vpop.permute.xlu0 %1159
        %1162 = vrot.lane.b32.xlu0 %v1127, 76
        %v1163 = vpop.permute.xlu0 %1162
        %1165 = vrot.lane.b32.xlu0 %v1127, 58
        %v1166 = vpop.permute.xlu0 %1165
        %1168 = vrot.lane.b32.xlu0 %v1127, 40
        %v1169 = vpop.permute.xlu0 %1168
        %1171 = vrot.lane.b32.xlu0 %v1127, 22
        %v1172 = vpop.permute.xlu0 %1171
        %1175 = vrot.lane.b32.xlu0 %v1127, 4
        %v1176 = vpop.permute.xlu0 %1175
        %1177 = vrot.lane.b32.xlu0 %v1128, 4
        %v1178 = vpop.permute.xlu0 %1177
        %v1179 = vsel %vm506, %v1176, %v1178
        %1181 = vrot.lane.b32.xlu0 %v1128, 114
        %v1182 = vpop.permute.xlu0 %1181
        %v1184 = vrot.slane %v1134, 4
        %vm1185 = vcmask 1047556
        %v1186 = vsel %vm1185, %v1184, %v1126
        %v1188 = vunpack.c.l.s4 1983009808
        %v1189 = vunpack.c.0.s8 %v1188
        %v1190 = vperm.slane %v1186, %v1189
        %v1191 = vrot.slane %v1137, 4
        %v1192 = vsel %vm1185, %v1191, %v1131
        %v1194 = vunpack.c.l.s4 1983009808
        %v1195 = vunpack.c.0.s8 %v1194
        %v1196 = vperm.slane %v1192, %v1195
        %v1197 = vrot.slane %v1146, 4
        %v1198 = vsel %vm1185, %v1197, %v1140
        %v1200 = vunpack.c.l.s4 1983009808
        %v1201 = vunpack.c.0.s8 %v1200
        %v1202 = vperm.slane %v1198, %v1201
        %v1203 = vrot.slane %v1154, 4
        %v1204 = vsel %vm1185, %v1203, %v1143
        %v1206 = vunpack.c.l.s4 1983009808
        %v1207 = vunpack.c.0.s8 %v1206
        %v1208 = vperm.slane %v1204, %v1207
        %v1209 = vrot.slane %v1196, 4
        %v1210 = vsel %vm1185, %v1209, %v1190
        %v1211 = vrot.slane %v1190, 4
        %v1212 = vsel %vm1185, %v1196, %v1211
        %v1214 = vunpack.c.l.s4 1934713408
        %v1215 = vunpack.c.0.s8 %v1214
        %v1216 = vperm.slane %v1210, %v1215
        %v1218 = vunpack.c.l.s4 1934713408
        %v1219 = vunpack.c.0.s8 %v1218
        %v1220 = vperm.slane %v1212, %v1219
        %v1221 = vrot.slane %v1208, 4
        %v1222 = vsel %vm1185, %v1221, %v1202
        %v1223 = vrot.slane %v1202, 4
        %v1224 = vsel %vm1185, %v1208, %v1223
        %v1226 = vunpack.c.l.s4 1934713408
        %v1227 = vunpack.c.0.s8 %v1226
        %v1228 = vperm.slane %v1222, %v1227
        %v1230 = vunpack.c.l.s4 1934713408
        %v1231 = vunpack.c.0.s8 %v1230
        %v1232 = vperm.slane %v1224, %v1231
        %v1233 = vrot.slane %v1228, 4
        %v1234 = vsel %vm1185, %v1233, %v1216
        %v1235 = vrot.slane %v1216, 4
        %v1236 = vsel %vm1185, %v1228, %v1235
        %v1237 = vrot.slane %v1232, 4
        %v1238 = vsel %vm1185, %v1237, %v1220
        %v1239 = vrot.slane %v1220, 4
        %v1240 = vsel %vm1185, %v1232, %v1239
        %v1241 = vrot.slane %v1163, 4
        %v1242 = vsel %vm1185, %v1241, %v1157
        %v1244 = vunpack.c.l.s4 1983009808
        %v1245 = vunpack.c.0.s8 %v1244
        %v1246 = vperm.slane %v1242, %v1245
        %v1247 = vrot.slane %v1166, 4
        %v1248 = vsel %vm1185, %v1247, %v1160
        %v1250 = vunpack.c.l.s4 1983009808
        %v1251 = vunpack.c.0.s8 %v1250
        %v1252 = vperm.slane %v1248, %v1251
        %v1253 = vrot.slane %v1179, 4
        %v1254 = vsel %vm1185, %v1253, %v1169
        %v1256 = vunpack.c.l.s4 1983009808
        %v1257 = vunpack.c.0.s8 %v1256
        %v1258 = vperm.slane %v1254, %v1257
        %v1259 = vrot.slane %v1182, 4
        %v1260 = vsel %vm1185, %v1259, %v1172
        %v1262 = vunpack.c.l.s4 1983009808
        %v1263 = vunpack.c.0.s8 %v1262
        %v1264 = vperm.slane %v1260, %v1263
        %v1265 = vrot.slane %v1252, 4
        %v1266 = vsel %vm1185, %v1265, %v1246
        %v1267 = vrot.slane %v1246, 4
        %v1268 = vsel %vm1185, %v1252, %v1267
        %v1270 = vunpack.c.l.s4 1934713408
        %v1271 = vunpack.c.0.s8 %v1270
        %v1272 = vperm.slane %v1266, %v1271
        %v1274 = vunpack.c.l.s4 1934713408
        %v1275 = vunpack.c.0.s8 %v1274
        %v1276 = vperm.slane %v1268, %v1275
        %v1277 = vrot.slane %v1264, 4
        %v1278 = vsel %vm1185, %v1277, %v1258
        %v1279 = vrot.slane %v1258, 4
        %v1280 = vsel %vm1185, %v1264, %v1279
        %v1282 = vunpack.c.l.s4 1934713408
        %v1283 = vunpack.c.0.s8 %v1282
        %v1284 = vperm.slane %v1278, %v1283
        %v1286 = vunpack.c.l.s4 1934713408
        %v1287 = vunpack.c.0.s8 %v1286
        %v1288 = vperm.slane %v1280, %v1287
        %v1289 = vrot.slane %v1284, 4
        %v1290 = vsel %vm1185, %v1289, %v1272
        %v1291 = vrot.slane %v1272, 4
        %v1292 = vsel %vm1185, %v1284, %v1291
        %v1293 = vrot.slane %v1288, 4
        %v1294 = vsel %vm1185, %v1293, %v1276
        %v1295 = vrot.slane %v1276, 4
        %v1296 = vsel %vm1185, %v1288, %v1295
        %v1297 = vrot.slane %v1238, 4
        %v1298 = vsel %vm1185, %v1297, %v1234
        %v1299 = vrot.slane %v1234, 4
        %v1300 = vsel %vm1185, %v1238, %v1299
        %v1302 = vunpack.c.l.s4 1983009808
        %v1303 = vunpack.c.0.s8 %v1302
        %v1304 = vperm.slane %v1298, %v1303
        %v1306 = vunpack.c.l.s4 1983009808
        %v1307 = vunpack.c.0.s8 %v1306
        %v1308 = vperm.slane %v1300, %v1307
        %v1309 = vrot.slane %v1240, 4
        %v1310 = vsel %vm1185, %v1309, %v1236
        %v1311 = vrot.slane %v1236, 4
        %v1312 = vsel %vm1185, %v1240, %v1311
        %v1314 = vunpack.c.l.s4 1983009808
        %v1315 = vunpack.c.0.s8 %v1314
        %v1316 = vperm.slane %v1310, %v1315
        %v1318 = vunpack.c.l.s4 1983009808
        %v1319 = vunpack.c.0.s8 %v1318
        %v1320 = vperm.slane %v1312, %v1319
        %v1321 = vrot.slane %v1316, 4
        %v1322 = vsel %vm1185, %v1321, %v1304
        %v1323 = vrot.slane %v1304, 4
        %v1324 = vsel %vm1185, %v1316, %v1323
        %v1326 = vunpack.c.l.s4 1934713408
        %v1327 = vunpack.c.0.s8 %v1326
        %v1328 = vperm.slane %v1322, %v1327
        %v1330 = vunpack.c.l.s4 1934713408
        %v1331 = vunpack.c.0.s8 %v1330
        %v1332 = vperm.slane %v1324, %v1331
        %v1333 = vrot.slane %v1320, 4
        %v1334 = vsel %vm1185, %v1333, %v1308
        %v1335 = vrot.slane %v1308, 4
        %v1336 = vsel %vm1185, %v1320, %v1335
        %v1338 = vunpack.c.l.s4 1934713408
        %v1339 = vunpack.c.0.s8 %v1338
        %v1340 = vperm.slane %v1334, %v1339
        %v1342 = vunpack.c.l.s4 1934713408
        %v1343 = vunpack.c.0.s8 %v1342
        %v1344 = vperm.slane %v1336, %v1343
        %v1345 = vrot.slane %v1328, 4
        %v1346 = vsel %vm1185, 0.0, %v1345
        %v1347 = vrot.slane %v1332, 4
        %v1348 = vsel %vm1185, 0.0, %v1347
        %v1349 = vrot.slane %v1340, 4
        %v1350 = vsel %vm1185, 0.0, %v1349
        %v1351 = vrot.slane %v1344, 4
        %v1352 = vsel %vm1185, 0.0, %v1351
        %v1353 = vrot.slane %v1294, 4
        %v1354 = vsel %vm1185, %v1353, %v1290
        %v1355 = vrot.slane %v1290, 4
        %v1356 = vsel %vm1185, %v1294, %v1355
        %v1358 = vunpack.c.l.s4 1983009808
        %v1359 = vunpack.c.0.s8 %v1358
        %v1360 = vperm.slane %v1354, %v1359
        %v1362 = vunpack.c.l.s4 1983009808
        %v1363 = vunpack.c.0.s8 %v1362
        %v1364 = vperm.slane %v1356, %v1363
        %v1365 = vrot.slane %v1296, 4
        %v1366 = vsel %vm1185, %v1365, %v1292
        %v1367 = vrot.slane %v1292, 4
        %v1368 = vsel %vm1185, %v1296, %v1367
        %v1370 = vunpack.c.l.s4 1983009808
        %v1371 = vunpack.c.0.s8 %v1370
        %v1372 = vperm.slane %v1366, %v1371
        %v1374 = vunpack.c.l.s4 1983009808
        %v1375 = vunpack.c.0.s8 %v1374
        %v1376 = vperm.slane %v1368, %v1375
        %v1377 = vrot.slane %v1372, 4
        %v1378 = vsel %vm1185, %v1377, %v1360
        %v1379 = vrot.slane %v1360, 4
        %v1380 = vsel %vm1185, %v1372, %v1379
        %v1382 = vunpack.c.l.s4 1934713408
        %v1383 = vunpack.c.0.s8 %v1382
        %v1384 = vperm.slane %v1378, %v1383
        %v1386 = vunpack.c.l.s4 1934713408
        %v1387 = vunpack.c.0.s8 %v1386
        %v1388 = vperm.slane %v1380, %v1387
        %v1389 = vrot.slane %v1376, 4
        %v1390 = vsel %vm1185, %v1389, %v1364
        %v1391 = vrot.slane %v1364, 4
        %v1392 = vsel %vm1185, %v1376, %v1391
        %v1394 = vunpack.c.l.s4 1934713408
        %v1395 = vunpack.c.0.s8 %v1394
        %v1396 = vperm.slane %v1390, %v1395
        %v1398 = vunpack.c.l.s4 1934713408
        %v1399 = vunpack.c.0.s8 %v1398
        %v1400 = vperm.slane %v1392, %v1399
        %v1401 = vrot.slane %v1384, 4
        %v1402 = vsel %vm1185, 0.0, %v1401
        %v1403 = vrot.slane %v1388, 4
        %v1404 = vsel %vm1185, 0.0, %v1403
        %v1405 = vrot.slane %v1396, 4
        %v1406 = vsel %vm1185, 0.0, %v1405
        %v1407 = vrot.slane %v1400, 4
        %v1408 = vsel %vm1185, 0.0, %v1407
        %1410 = vrot.lane.b32.xlu0 %v1346, 16
        %v1411 = vpop.permute.xlu0 %1410
        %1414 = vrot.lane.b32.xlu0 %v1332, 32
        %v1415 = vpop.permute.xlu0 %1414
        %1418 = vrot.lane.b32.xlu0 %v1348, 48
        %v1419 = vpop.permute.xlu0 %1418
        %1422 = vrot.lane.b32.xlu0 %v1340, 64
        %v1423 = vpop.permute.xlu0 %1422
        %1426 = vrot.lane.b32.xlu0 %v1350, 80
        %v1427 = vpop.permute.xlu0 %1426
        %1430 = vrot.lane.b32.xlu0 %v1344, 96
        %v1431 = vpop.permute.xlu0 %1430
        %1434 = vrot.lane.b32.xlu0 %v1352, 112
        %v1435 = vpop.permute.xlu0 %1434
        %1438 = vrot.lane.b32.xlu0 %v1402, 16
        %v1439 = vpop.permute.xlu0 %1438
        %1442 = vrot.lane.b32.xlu0 %v1388, 32
        %v1443 = vpop.permute.xlu0 %1442
        %1446 = vrot.lane.b32.xlu0 %v1404, 48
        %v1447 = vpop.permute.xlu0 %1446
        %1450 = vrot.lane.b32.xlu0 %v1396, 64
        %v1451 = vpop.permute.xlu0 %1450
        %1454 = vrot.lane.b32.xlu0 %v1406, 80
        %v1455 = vpop.permute.xlu0 %1454
        %1458 = vrot.lane.b32.xlu0 %v1400, 96
        %v1459 = vpop.permute.xlu0 %1458
        %1462 = vrot.lane.b32.xlu0 %v1408, 112
        %v1463 = vpop.permute.xlu0 %1462
        %vm1465 = vcmask 130048
        %v1466 = vsel %vm1465, %v1328, %v1411
        %vm1467 = vcmask 261120
        %v1468 = vsel %vm1467, %v1466, %v1415
        %vm1469 = vcmask 392192
        %v1470 = vsel %vm1469, %v1468, %v1419
        %vm1471 = vcmask 523264
        %v1472 = vsel %vm1471, %v1470, %v1423
        %vm1473 = vcmask 654336
        %v1474 = vsel %vm1473, %v1472, %v1427
        %vm1475 = vcmask 785408
        %v1476 = vsel %vm1475, %v1474, %v1431
        %vm1477 = vcmask 916480
        %v1478 = vsel %vm1477, %v1476, %v1435
        %v1479 = vsel %vm1465, %v1384, %v1439
        %v1480 = vsel %vm1467, %v1479, %v1443
        %v1481 = vsel %vm1469, %v1480, %v1447
        %v1482 = vsel %vm1471, %v1481, %v1451
        %v1483 = vsel %vm1473, %v1482, %v1455
        %v1484 = vsel %vm1475, %v1483, %v1459
        %v1485 = vsel %vm1477, %v1484, %v1463
        %vm1486 = vcmask 1043456
        %v1487 = vsel %vm1486, %v1478, 0.0
        %v1488 = vsel %vm1486, %v1485, 0.0
        %v1489 = vadd.f32 %v1487, %v1488
        %1490 = vadd.xlane.f32.xlu0 %v1489
        %v1491 = vpop.xlane.xlu0 %1490
        %v1492 = vmul.f32 %v1491, 0.00390625
        %v1493 = vsub.f32 %v1478, %v1492
        %v1494 = vsub.f32 %v1485, %v1492
        %v1495 = vmul.f32 %v1493, %v1493
        %v1496 = vmul.f32 %v1494, %v1494
        %v1497 = vsel %vm1486, %v1495, 0.0
        %v1498 = vsel %vm1486, %v1496, 0.0
        %v1499 = vadd.f32 %v1497, %v1498
        %1500 = vadd.xlane.f32.xlu0 %v1499
        %v1501 = vpop.xlane.xlu0 %1500
        %v1502 = vmul.f32 %v1501, 0.00390625
        %v1503 = vadd.f32 %v1502, 1e-05
        %v1504 = vrsqrt.pop %v1503
        %v1505 = vmul.f32 %v1504, %v1503
        %v1506 = vmul.f32 %v1505, %v1504
        %v1507 = vmul.f32 0.5, %v1506
        %v1508 = vsub.f32 1.5, %v1507
        %v1509 = vmul.f32 %v1504, %v1508
        %vm1510 = vweird.f32 %v1503
        %vm1511 = vweird.f32 %v1504
        %vm1512 = vmor %vm1510, %vm1511
        %v1513 = vsel %vm1512, %v1504, %v1509
        %s1514 = smul.u32 %s21, 4
        %s1515 = sshra.s32 %s1514, 2
        %s1516 = sand.u32 %s1514, 3
        %s1517 = smul.u32 %s1515, 2
        %s1518 = smul.addr %s1517, 4
        %s1519 = scalar_lea.vmem %s168, %s1518
        %v1520 = vld [vmem:[%s1519] sm:$0xff]
        %v1521 = vmul.f32 %v1493, %v1513
        %v1522 = vmul.f32 %v1494, %v1513
        %v1525 = vrot.slane %v1522, 4
        %v1526 = vsel %vm1486, %v1521, %v1525
        %v1528 = vadd.f32 %v1520, %v1526
        %1529 = vst [vmem:[%s163] sm:$0xff] %v1528
        %s1530 = sand.u32 %s90, 1
        %s1531 = scalar_lea.sflag [#allocation4], %s1530
        %s1532 = sand.u32 %s90, 1
        %s1533 = smul.addr %s1532, 8
        %s1534 = scalar_lea.vmem [#allocation3], %s1533
        // Predicated region
        $region33: #{tpu_custom_call.1} parent=27 // pred_check
          %p1535 = pneg %p100
        $region34: #{tpu_custom_call.1} parent=27 // pred_check_branch
          %1537 = sbr.rel (%p1535) target = $region36
        $region35: #{tpu_custom_call.1} parent=27 // pred_region
          %1539 = vsyncadd %s1531, 0
          %s1540 = smul.addr %s21, 2
          %s1541 = smul.addr %s20, 2
          %s1542 = sadd.s32 %s1540, %s1541
          %s1543 = smul.addr %s1542, 4
          %s1544 = scalar_lea.hbm %s2, %s1543
          %s1546 = sshll.u32 %s1534, 4
          %s1547 = int_to_ptr.vmem [resolvable:$true] %s1546
          %s1548 = sshll.u32 %s1544, 4
          %s1549 = int_to_ptr.hbm [resolvable:$true] %s1548
          %1551 = dma.vmem_to_hbm [thread:$0]  %s1547, 128, %s1549, %s1531
        $region36: #{tpu_custom_call.1} parent=27 // pred_fallthru
          _
      $region28: #{tpu_custom_call.1} parent=5 // pred_fallthru
        _
      %p1552 = scmp.le.s32.totalorder 2, %s11
      // Predicated region
      $region37: #{tpu_custom_call.1} parent=5 // pred_check
        %p1553 = pneg %p1552
      $region38: #{tpu_custom_call.1} parent=5 // pred_check_branch
        %1555 = sbr.rel (%p1553) target = $region40
      $region39: #{tpu_custom_call.1} parent=5 // pred_region
        %s1556 = ssub.s32 %s11, 2
        // Predicated region
        $region41: #{tpu_custom_call.1} parent=39 // pred_check
          %p1557 = pneg %p106
        $region42: #{tpu_custom_call.1} parent=39 // pred_check_branch
          %1559 = sbr.rel (%p1557) target = $region44
        $region43: #{tpu_custom_call.1} parent=39 // pred_region
          %s1560 = sand.u32 %s91, 1
          %s1561 = scalar_lea.sflag [#allocation4], %s1560
          %s1562 = sand.u32 %s91, 1
          %s1563 = smul.addr %s1562, 8
          %s1564 = scalar_lea.vmem [#allocation3], %s1563
          %1566 = dma.done %s1561, 128
        $region44: #{tpu_custom_call.1} parent=39 // pred_fallthru
          _
      $region40: #{tpu_custom_call.1} parent=5 // pred_fallthru
        _
    $region6: #{tpu_custom_call.1} parent=1 // loop_footer
      %s15 = sadd.s32 1, %s11
    $region7: #{tpu_custom_call.1} parent=1 // loop_footer_branch
      %10 = sbr.rel target = $region3
    $region8: #{tpu_custom_call.1} parent=1 // loop_exit
      _
    %1567 = vsyncpa [#allocation4], 1
    %s1568 = scalar_lea.sflag [#allocation4], 1
    %1569 = vsyncpa %s1568, 1

</llo_original>
